<compile_context>
chip_gen: v7x
topology: tpu7x:2x2x1
jax: 0.10.0
libtpu: 0.0.40
codegen_flags: <defaults>
</compile_context>

<pallas_src>
import functools

import jax
import jax.numpy as jnp
from jax.experimental import pallas as pl
from jax.experimental.pallas import tpu as pltpu

LANE = 128       # lane width (last dim)
SUBLANE = 8      # f32 sublane width
BF16_SUBLANE = 16  # bf16 packs 16 rows per vreg


def _round_up(x, m):
    return ((x + m - 1) // m) * m


def _pad2(a, rows, cols):
    return jnp.pad(a, ((0, rows - a.shape[0]), (0, cols - a.shape[1])))


def _vmem_limit_bytes():
    """Generation-aware VMEM cap: physical minus ~8 MiB headroom, max 100 MiB."""
    try:
        cap = pltpu.get_tpu_info().vmem_capacity_bytes
    except Exception:
        cap = 64 * 1024 * 1024
    return max(32 * 1024 * 1024, min(cap - 8 * 1024 * 1024, 100 * 1024 * 1024))


# ----------------------------- fused Pallas kernel ---------------------------

def _make_fused_kernel(n_layers, has_proj):
    """Single fused forward kernel for a given (static) layer count."""

    def kernel(*refs):
        it = iter(refs)
        a_ref = next(it)                       # (Np, Np) bf16 mean-aggregation
        x_ref = next(it)                       # (Np, Dp) f32 node features
        pw_ref = next(it) if has_proj else None     # (Dp, Hp) bf16
        w0_ref = next(it)                      # (2*Dp, Hp) bf16  [Wl0 ; Wr0]
        wr_ref = next(it) if n_layers > 1 else None  # (L-1, 2*Hp, Hp) bf16
        bias_ref = next(it)                    # (Bp, Hp) f32 bias slab
        p_ref = next(it)                       # (Gp, Np) bf16 pooling matrix
        w1_ref = next(it)                      # (Hp, Hp) bf16 (BatchNorm folded)
        w2_ref = next(it)                      # (Hp, Cp) bf16
        b2_ref = next(it)                      # (1, Cp)  f32
        emb_ref = next(it)                     # (Np, Hp) f32 out
        z_ref = next(it)                       # (Gp, Cp) f32 out

        a = a_ref[...]                         # stays resident for all layers
        x = x_ref[...]                         # f32
        biases = bias_ref[...]                 # f32 slab, loaded once
        h = x.astype(jnp.bfloat16)             # bf16 matmul operand for layer 0

        # x_residual = input_proj(x) if dims differ, else x (kept in f32).
        if has_proj:
            residual = (jnp.dot(h, pw_ref[...],
                                preferred_element_type=jnp.float32)
                        + biases[n_layers + 1][None, :])
        else:
            residual = x

        for layer in range(n_layers):          # unrolled, static
            # SAGEConv(mean): [A_mean @ h | h] @ [Wl ; Wr] + b_l  (K=2*fin fused)
            agg = jnp.dot(a, h, preferred_element_type=jnp.float32)
            lhs = jnp.concatenate([agg.astype(jnp.bfloat16), h], axis=1)
            w_cat = w0_ref[...] if layer == 0 else wr_ref[layer - 1]
            conv = (jnp.dot(lhs, w_cat, preferred_element_type=jnp.float32)
                    + biases[layer][None, :])
            # TODO(synk): training-mode Dropout(p=0.2) between layers omitted
            # (eval => identity).
            out = jnp.maximum(conv, 0.0) + residual   # relu(conv) + residual
            residual = out                            # f32, next layer residual
            h = out.astype(jnp.bfloat16)              # bf16 matmul operand

        emb_ref[...] = residual                       # node_embeddings[-1] (f32)

        # global_add_pool == P @ h, fused into the same kernel.
        pooled = jnp.dot(p_ref[...], h, preferred_element_type=jnp.float32)

        # Dense head: Linear (+ folded eval-mode BatchNorm) -> ReLU -> Linear.
        hid = (jnp.dot(pooled.astype(jnp.bfloat16), w1_ref[...],
                       preferred_element_type=jnp.float32)
               + biases[n_layers][None, :])
        hid = jnp.maximum(hid, 0.0)
        # TODO(synk): head Dropout(p=0.2) omitted (eval => identity).
        z_ref[...] = (jnp.dot(hid.astype(jnp.bfloat16), w2_ref[...],
                              preferred_element_type=jnp.float32) + b2_ref[...])

    return kernel


# ------------------------------- params --------------------------------------

def init_params(key, input_dim, hidden_dim, n_classes, n_layers):
    params = {"layers": []}
    dims = [input_dim] + [hidden_dim] * n_layers
    for i in range(n_layers):
        key, k1, k2 = jax.random.split(key, 3)
        f_in = dims[i]
        params["layers"].append({
            "wl": 0.1 * jax.random.normal(k1, (f_in, hidden_dim), jnp.float32),
            "bl": jnp.zeros((1, hidden_dim), jnp.float32),
            "wr": 0.1 * jax.random.normal(k2, (f_in, hidden_dim), jnp.float32),
        })
    if input_dim != hidden_dim:
        key, kp = jax.random.split(key)
        params["proj_w"] = 0.1 * jax.random.normal(kp, (input_dim, hidden_dim),
                                                   jnp.float32)
        params["proj_b"] = jnp.zeros((1, hidden_dim), jnp.float32)
    key, k1, k2 = jax.random.split(key, 3)
    params["dense"] = {
        "w1": 0.1 * jax.random.normal(k1, (hidden_dim, hidden_dim), jnp.float32),
        "b1": jnp.zeros((1, hidden_dim), jnp.float32),
        "bn_gamma": jnp.ones((1, hidden_dim), jnp.float32),
        "bn_beta": jnp.zeros((1, hidden_dim), jnp.float32),
        "bn_mean": jnp.zeros((1, hidden_dim), jnp.float32),   # running stats (eval)
        "bn_var": jnp.ones((1, hidden_dim), jnp.float32),
        "w2": 0.1 * jax.random.normal(k2, (hidden_dim, n_classes), jnp.float32),
        "b2": jnp.zeros((1, n_classes), jnp.float32),
    }
    return params


def prepare_params(params, input_dim, hidden_dim, n_classes):
    """One-time prep: fold eval BatchNorm into w1/b1, stack Wl/Wr along K,
    pack biases into one slab, pad to lane-dense shapes, cast weights to bf16.

    Returns (prepped_arrays, cfg) where cfg is plain-Python static config.
    """
    n_layers = len(params["layers"])
    has_proj = "proj_w" in params
    dp = _round_up(input_dim, LANE)
    hp = _round_up(hidden_dim, LANE)
    cp = _round_up(n_classes, LANE)

    cfg = {"input_dim": input_dim, "hidden_dim": hidden_dim,
           "n_classes": n_classes, "dp": dp, "hp": hp, "cp": cp,
           "n_layers": n_layers, "has_proj": has_proj}

    prepped = {}

    # Layer 0 weights: [Wl ; Wr] stacked along the contraction dim (K=2*Dp).
    l0 = params["layers"][0]
    w_cat0 = jnp.concatenate(
        [_pad2(l0["wl"], dp, hp), _pad2(l0["wr"], dp, hp)], axis=0)
    prepped["w_cat0"] = w_cat0.astype(jnp.bfloat16)

    # Layers 1..L-1 packed into one 3-D array (K=2*Hp each).
    rest = []
    for i in range(1, n_layers):
        lyr = params["layers"][i]
        rest.append(jnp.concatenate(
            [_pad2(lyr["wl"], hp, hp), _pad2(lyr["wr"], hp, hp)], axis=0))
    if rest:
        prepped["w_cat_rest"] = jnp.stack(rest, axis=0).astype(jnp.bfloat16)

    if has_proj:
        prepped["proj_w"] = _pad2(params["proj_w"], dp, hp).astype(jnp.bfloat16)

    d = params["dense"]
    # Fold eval-mode BatchNorm1d into the first head Linear.
    scale = d["bn_gamma"] * jax.lax.rsqrt(d["bn_var"] + 1e-5)          # (1, H)
    w1_folded = d["w1"] * scale                                        # (H, H)
    b1_folded = (d["b1"] - d["bn_mean"]) * scale + d["bn_beta"]        # (1, H)
    prepped["w1"] = _pad2(w1_folded, hp, hp).astype(jnp.bfloat16)
    prepped["w2"] = _pad2(d["w2"], hp, cp).astype(jnp.bfloat16)
    prepped["b2"] = _pad2(d["b2"], 1, cp)

    # Bias slab (f32): rows 0..L-1 layer biases, row L = folded b1, row L+1 = proj_b.
    slab_rows = _round_up(n_layers + 2, SUBLANE)
    slab = jnp.zeros((slab_rows, hp), jnp.float32)
    for i, lyr in enumerate(params["layers"]):
        slab = slab.at[i, :hidden_dim].set(lyr["bl"][0])
    slab = slab.at[n_layers, :hidden_dim].set(b1_folded[0])
    if has_proj:
        slab = slab.at[n_layers + 1, :hidden_dim].set(params["proj_b"][0])
    prepped["bias_slab"] = slab

    return prepped, cfg


# ------------------------------ model forward --------------------------------

def model_forward(prepped, x, edge_index, batch, *, cfg, n_graphs):
    input_dim, hidden_dim, n_classes = (cfg["input_dim"], cfg["hidden_dim"],
                                        cfg["n_classes"])
    dp, hp, cp = cfg["dp"], cfg["hp"], cfg["cp"]
    n_layers, has_proj = cfg["n_layers"], cfg["has_proj"]

    n = x.shape[0]
    np_ = _round_up(n, LANE)           # lane-dense K for A@h and P@h
    gp = _round_up(n_graphs, BF16_SUBLANE)

    # Dense mean-aggregation matrix: A_mean[i, j] = 1/in_deg(i) if edge j->i.
    # TODO(synk): for large/sparse graphs, replace with CSR neighbor lists +
    # PrefetchScalarGridSpec gather inside the kernel (O(E*D) instead of O(N^2*D)).
    src, dst = edge_index[0], edge_index[1]
    adj = jnp.zeros((n, n), jnp.float32).at[dst, src].add(1.0)
    deg = adj.sum(axis=1, keepdims=True)
    a_mean = jnp.where(deg > 0, adj / jnp.maximum(deg, 1.0), 0.0)
    a_mean = _pad2(a_mean, np_, np_).astype(jnp.bfloat16)

    # Pooling matrix for global_add_pool (zero padding is inert).
    pool = (batch[None, :] == jnp.arange(n_graphs)[:, None]).astype(jnp.float32)
    pool = _pad2(pool, gp, np_).astype(jnp.bfloat16)

    x_p = _pad2(x, np_, dp)            # f32 (residual precision when no proj)

    kernel = _make_fused_kernel(n_layers, has_proj)

    inputs = [a_mean, x_p]
    if has_proj:
        inputs.append(prepped["proj_w"])
    inputs.append(prepped["w_cat0"])
    if n_layers > 1:
        inputs.append(prepped["w_cat_rest"])
    inputs += [prepped["bias_slab"], pool, prepped["w1"], prepped["w2"],
               prepped["b2"]]

    # Advisory cost estimate for the XLA scheduler.
    f_ins = [dp] + [hp] * (n_layers - 1)
    flops = (2 * np_ * dp * hp) if has_proj else 0
    for f in f_ins:
        flops += 2 * np_ * np_ * f + 2 * np_ * (2 * f) * hp
    flops += 2 * gp * np_ * hp + 2 * gp * hp * hp + 2 * gp * hp * cp
    bytes_accessed = (sum(int(a.size) * a.dtype.itemsize for a in inputs)
                      + 4 * (np_ * hp + gp * cp))

    emb_p, z_p = pl.pallas_call(
        kernel,
        out_shape=(jax.ShapeDtypeStruct((np_, hp), jnp.float32),
                   jax.ShapeDtypeStruct((gp, cp), jnp.float32)),
        compiler_params=pltpu.CompilerParams(
            vmem_limit_bytes=_vmem_limit_bytes()),
        cost_estimate=pl.CostEstimate(flops=flops, transcendentals=0,
                                      bytes_accessed=bytes_accessed),
    )(*inputs)

    return emb_p[:n, :hidden_dim], z_p[:n_graphs, :n_classes]


# ------------------------- pure-JAX reference (f32) --------------------------

def _reference_forward(params, x, edge_index, batch, n_graphs):
    n = x.shape[0]
    src, dst = edge_index[0], edge_index[1]
    adj = jnp.zeros((n, n), jnp.float32).at[dst, src].add(1.0)
    deg = adj.sum(axis=1, keepdims=True)
    a_mean = jnp.where(deg > 0, adj / jnp.maximum(deg, 1.0), 0.0)

    residual = x @ params["proj_w"] + params["proj_b"] if "proj_w" in params else x
    h = x
    for lyr in params["layers"]:
        conv = (a_mean @ h) @ lyr["wl"] + lyr["bl"] + h @ lyr["wr"]
        h = jnp.maximum(conv, 0.0) + residual
        residual = h

    pool = (batch[None, :] == jnp.arange(n_graphs)[:, None]).astype(jnp.float32)
    pooled = pool @ h
    d = params["dense"]
    z = pooled @ d["w1"] + d["b1"]
    z = ((z - d["bn_mean"]) * jax.lax.rsqrt(d["bn_var"] + 1e-5)
         * d["bn_gamma"] + d["bn_beta"])
    z = jnp.maximum(z, 0.0)
    z = z @ d["w2"] + d["b2"]
    return h, z


# --------------------------------- main ---------------------------------------

if __name__ == "__main__":
    INPUT_DIM, HIDDEN_DIM, N_CLASSES, N_LAYERS = 8, 32, 4, 3
    N_NODES, N_GRAPHS = 16, 2

    key = jax.random.PRNGKey(0)
    key, kx = jax.random.split(key)
    params = init_params(key, INPUT_DIM, HIDDEN_DIM, N_CLASSES, N_LAYERS)
    prepped, cfg = prepare_params(params, INPUT_DIM, HIDDEN_DIM, N_CLASSES)

    x = jax.random.normal(kx, (N_NODES, INPUT_DIM), jnp.float32)
    # Two 8-node ring graphs (bidirectional edges), nodes 0-7 and 8-15.
    src_list, dst_list = [], []
    for g0 in (0, 8):
        for i in range(8):
            a, b = g0 + i, g0 + (i + 1) % 8
            src_list += [a, b]
            dst_list += [b, a]
    edge_index = jnp.array([src_list, dst_list], dtype=jnp.int32)  # [2, E]
    batch = jnp.array([0] * 8 + [1] * 8, dtype=jnp.int32)

    fwd = jax.jit(functools.partial(model_forward, cfg=cfg, n_graphs=N_GRAPHS))
    node_emb, z = fwd(prepped, x, edge_index, batch)
    jax.block_until_ready((node_emb, z))

    assert node_emb.shape == (N_NODES, HIDDEN_DIM)
    assert z.shape == (N_GRAPHS, N_CLASSES)
    assert bool(jnp.all(jnp.isfinite(node_emb))) and bool(jnp.all(jnp.isfinite(z)))

    # Numerical check against a pure-f32 JAX reference (bf16 matmul tolerance).
    emb_ref, z_ref = _reference_forward(params, x, edge_index, batch, N_GRAPHS)
    assert jnp.allclose(node_emb, emb_ref, atol=5e-2, rtol=5e-2)
    assert jnp.allclose(z, z_ref, atol=5e-2, rtol=5e-2)

    print("KERNEL_OK")
</pallas_src>

<mosaic_0001>
module attributes {stable_mosaic.version = 11 : i64} {
  func.func private @main(%arg0: i32) attributes {dimension_semantics = [#tpu.dimension_semantics<core_parallel>], iteration_bounds = array<i64: 2>, tpu.core_type = #tpu.core_type<sc_scalar_subcore>, window_params = []} {
    return
  }
}

module attributes {stable_mosaic.version = 11 : i64} {
  func.func private @main(%arg0: i32) attributes {dimension_semantics = [#tpu.dimension_semantics<core_parallel>], iteration_bounds = array<i64: 2>, tpu.core_type = #tpu.core_type<sc_scalar_subcore>, window_params = []} {
    return
  }
}

module attributes {stable_mosaic.version = 11 : i64} {
  func.func @kernel(%arg0: memref<128x128xbf16, #tpu.memory_space<vmem>>, %arg1: memref<128x128xf32, #tpu.memory_space<vmem>>, %arg2: memref<128x128xbf16, #tpu.memory_space<vmem>>, %arg3: memref<256x128xbf16, #tpu.memory_space<vmem>>, %arg4: memref<2x256x128xbf16, #tpu.memory_space<vmem>>, %arg5: memref<8x128xf32, #tpu.memory_space<vmem>>, %arg6: memref<16x128xbf16, #tpu.memory_space<vmem>>, %arg7: memref<128x128xbf16, #tpu.memory_space<vmem>>, %arg8: memref<128x128xbf16, #tpu.memory_space<vmem>>, %arg9: memref<1x128xf32, #tpu.memory_space<vmem>>, %arg10: memref<128x128xf32, #tpu.memory_space<vmem>>, %arg11: memref<16x128xf32, #tpu.memory_space<vmem>>) attributes {dimension_semantics = [], scalar_prefetch = 0 : i64, scratch_operands = 0 : i64, tpu.core_type = #tpu.core_type<tc>} {
    %c0 = arith.constant 0 : index
    %c0_0 = arith.constant 0 : index
    %0 = vector.load %arg0[%c0, %c0_0] : memref<128x128xbf16, #tpu.memory_space<vmem>>, vector<128x128xbf16>
    %c0_1 = arith.constant 0 : index
    %c0_2 = arith.constant 0 : index
    %1 = vector.load %arg1[%c0_1, %c0_2] : memref<128x128xf32, #tpu.memory_space<vmem>>, vector<128x128xf32>
    %c0_3 = arith.constant 0 : index
    %c0_4 = arith.constant 0 : index
    %2 = vector.load %arg5[%c0_3, %c0_4] : memref<8x128xf32, #tpu.memory_space<vmem>>, vector<8x128xf32>
    %3 = arith.truncf %1 : vector<128x128xf32> to vector<128x128xbf16>
    %c0_5 = arith.constant 0 : index
    %c0_6 = arith.constant 0 : index
    %4 = vector.load %arg2[%c0_5, %c0_6] : memref<128x128xbf16, #tpu.memory_space<vmem>>, vector<128x128xbf16>
    %cst = arith.constant dense<0.000000e+00> : vector<128x128xf32>
    %5 = tpu.matmul %3, %4, %cst {dimension_numbers = #tpu.dot_dimension_numbers<[1], [0], [0], [1], [0, 0, 1, 1], [], []>} : vector<128x128xbf16>, vector<128x128xbf16>, vector<128x128xf32> -> vector<128x128xf32>
    %6 = vector.extract_strided_slice %2 {offsets = [4, 0], sizes = [1, 128], strides = [1, 1]} : vector<8x128xf32> to vector<1x128xf32>
    %7 = vector.shape_cast %6 : vector<1x128xf32> to vector<128xf32>
    %8 = vector.shape_cast %7 : vector<128xf32> to vector<1x128xf32>
    %9 = vector.broadcast %8 : vector<1x128xf32> to vector<128x128xf32>
    %10 = arith.addf %5, %9 : vector<128x128xf32>
    %cst_7 = arith.constant dense<0.000000e+00> : vector<128x128xf32>
    %11 = tpu.matmul %0, %3, %cst_7 {dimension_numbers = #tpu.dot_dimension_numbers<[1], [0], [0], [1], [0, 0, 1, 1], [], []>} : vector<128x128xbf16>, vector<128x128xbf16>, vector<128x128xf32> -> vector<128x128xf32>
    %12 = arith.truncf %11 : vector<128x128xf32> to vector<128x128xbf16>
    %13 = tpu.concatenate %12, %3 in 1 : vector<128x128xbf16>, vector<128x128xbf16> -> vector<128x256xbf16>
    %c0_8 = arith.constant 0 : index
    %c0_9 = arith.constant 0 : index
    %14 = vector.load %arg3[%c0_8, %c0_9] : memref<256x128xbf16, #tpu.memory_space<vmem>>, vector<256x128xbf16>
    %cst_10 = arith.constant dense<0.000000e+00> : vector<128x128xf32>
    %15 = tpu.matmul %13, %14, %cst_10 {dimension_numbers = #tpu.dot_dimension_numbers<[1], [0], [0], [1], [0, 0, 1, 1], [], []>} : vector<128x256xbf16>, vector<256x128xbf16>, vector<128x128xf32> -> vector<128x128xf32>
    %16 = vector.extract_strided_slice %2 {offsets = [0, 0], sizes = [1, 128], strides = [1, 1]} : vector<8x128xf32> to vector<1x128xf32>
    %17 = vector.shape_cast %16 : vector<1x128xf32> to vector<128xf32>
    %18 = vector.shape_cast %17 : vector<128xf32> to vector<1x128xf32>
    %19 = vector.broadcast %18 : vector<1x128xf32> to vector<128x128xf32>
    %20 = arith.addf %15, %19 : vector<128x128xf32>
    %cst_11 = arith.constant 0.000000e+00 : f32
    %21 = vector.broadcast %cst_11 : f32 to vector<128x128xf32>
    %22 = arith.maximumf %20, %21 : vector<128x128xf32>
    %23 = arith.addf %22, %10 : vector<128x128xf32>
    %24 = arith.truncf %23 : vector<128x128xf32> to vector<128x128xbf16>
    %cst_12 = arith.constant dense<0.000000e+00> : vector<128x128xf32>
    %25 = tpu.matmul %0, %24, %cst_12 {dimension_numbers = #tpu.dot_dimension_numbers<[1], [0], [0], [1], [0, 0, 1, 1], [], []>} : vector<128x128xbf16>, vector<128x128xbf16>, vector<128x128xf32> -> vector<128x128xf32>
    %26 = arith.truncf %25 : vector<128x128xf32> to vector<128x128xbf16>
    %27 = tpu.concatenate %26, %24 in 1 : vector<128x128xbf16>, vector<128x128xbf16> -> vector<128x256xbf16>
    %c0_13 = arith.constant 0 : index
    %c0_14 = arith.constant 0 : index
    %c0_15 = arith.constant 0 : index
    %28 = vector.load %arg4[%c0_13, %c0_14, %c0_15] : memref<2x256x128xbf16, #tpu.memory_space<vmem>>, vector<1x256x128xbf16>
    %29 = vector.shape_cast %28 : vector<1x256x128xbf16> to vector<256x128xbf16>
    %cst_16 = arith.constant dense<0.000000e+00> : vector<128x128xf32>
    %30 = tpu.matmul %27, %29, %cst_16 {dimension_numbers = #tpu.dot_dimension_numbers<[1], [0], [0], [1], [0, 0, 1, 1], [], []>} : vector<128x256xbf16>, vector<256x128xbf16>, vector<128x128xf32> -> vector<128x128xf32>
    %31 = vector.extract_strided_slice %2 {offsets = [1, 0], sizes = [1, 128], strides = [1, 1]} : vector<8x128xf32> to vector<1x128xf32>
    %32 = vector.shape_cast %31 : vector<1x128xf32> to vector<128xf32>
    %33 = vector.shape_cast %32 : vector<128xf32> to vector<1x128xf32>
    %34 = vector.broadcast %33 : vector<1x128xf32> to vector<128x128xf32>
    %35 = arith.addf %30, %34 : vector<128x128xf32>
    %cst_17 = arith.constant 0.000000e+00 : f32
    %36 = vector.broadcast %cst_17 : f32 to vector<128x128xf32>
    %37 = arith.maximumf %35, %36 : vector<128x128xf32>
    %38 = arith.addf %37, %23 : vector<128x128xf32>
    %39 = arith.truncf %38 : vector<128x128xf32> to vector<128x128xbf16>
    %cst_18 = arith.constant dense<0.000000e+00> : vector<128x128xf32>
    %40 = tpu.matmul %0, %39, %cst_18 {dimension_numbers = #tpu.dot_dimension_numbers<[1], [0], [0], [1], [0, 0, 1, 1], [], []>} : vector<128x128xbf16>, vector<128x128xbf16>, vector<128x128xf32> -> vector<128x128xf32>
    %41 = arith.truncf %40 : vector<128x128xf32> to vector<128x128xbf16>
    %42 = tpu.concatenate %41, %39 in 1 : vector<128x128xbf16>, vector<128x128xbf16> -> vector<128x256xbf16>
    %c1 = arith.constant 1 : index
    %c0_19 = arith.constant 0 : index
    %c0_20 = arith.constant 0 : index
    %43 = vector.load %arg4[%c1, %c0_19, %c0_20] : memref<2x256x128xbf16, #tpu.memory_space<vmem>>, vector<1x256x128xbf16>
    %44 = vector.shape_cast %43 : vector<1x256x128xbf16> to vector<256x128xbf16>
    %cst_21 = arith.constant dense<0.000000e+00> : vector<128x128xf32>
    %45 = tpu.matmul %42, %44, %cst_21 {dimension_numbers = #tpu.dot_dimension_numbers<[1], [0], [0], [1], [0, 0, 1, 1], [], []>} : vector<128x256xbf16>, vector<256x128xbf16>, vector<128x128xf32> -> vector<128x128xf32>
    %46 = vector.extract_strided_slice %2 {offsets = [2, 0], sizes = [1, 128], strides = [1, 1]} : vector<8x128xf32> to vector<1x128xf32>
    %47 = vector.shape_cast %46 : vector<1x128xf32> to vector<128xf32>
    %48 = vector.shape_cast %47 : vector<128xf32> to vector<1x128xf32>
    %49 = vector.broadcast %48 : vector<1x128xf32> to vector<128x128xf32>
    %50 = arith.addf %45, %49 : vector<128x128xf32>
    %cst_22 = arith.constant 0.000000e+00 : f32
    %51 = vector.broadcast %cst_22 : f32 to vector<128x128xf32>
    %52 = arith.maximumf %50, %51 : vector<128x128xf32>
    %53 = arith.addf %52, %38 : vector<128x128xf32>
    %54 = arith.truncf %53 : vector<128x128xf32> to vector<128x128xbf16>
    %c0_23 = arith.constant 0 : index
    %c0_24 = arith.constant 0 : index
    %55 = vector.load %arg10[%c0_23, %c0_24] : memref<128x128xf32, #tpu.memory_space<vmem>>, vector<128x128xf32>
    tpu.vector_store %arg10[%c0_23, %c0_24], %53 {strides = array<i32>} : memref<128x128xf32, #tpu.memory_space<vmem>>, vector<128x128xf32>,
    %c0_25 = arith.constant 0 : index
    %c0_26 = arith.constant 0 : index
    %56 = vector.load %arg6[%c0_25, %c0_26] : memref<16x128xbf16, #tpu.memory_space<vmem>>, vector<16x128xbf16>
    %cst_27 = arith.constant dense<0.000000e+00> : vector<16x128xf32>
    %57 = tpu.matmul %56, %54, %cst_27 {dimension_numbers = #tpu.dot_dimension_numbers<[1], [0], [0], [1], [0, 0, 1, 1], [], []>} : vector<16x128xbf16>, vector<128x128xbf16>, vector<16x128xf32> -> vector<16x128xf32>
    %58 = arith.truncf %57 : vector<16x128xf32> to vector<16x128xbf16>
    %c0_28 = arith.constant 0 : index
    %c0_29 = arith.constant 0 : index
    %59 = vector.load %arg7[%c0_28, %c0_29] : memref<128x128xbf16, #tpu.memory_space<vmem>>, vector<128x128xbf16>
    %cst_30 = arith.constant dense<0.000000e+00> : vector<16x128xf32>
    %60 = tpu.matmul %58, %59, %cst_30 {dimension_numbers = #tpu.dot_dimension_numbers<[1], [0], [0], [1], [0, 0, 1, 1], [], []>} : vector<16x128xbf16>, vector<128x128xbf16>, vector<16x128xf32> -> vector<16x128xf32>
    %61 = vector.extract_strided_slice %2 {offsets = [3, 0], sizes = [1, 128], strides = [1, 1]} : vector<8x128xf32> to vector<1x128xf32>
    %62 = vector.shape_cast %61 : vector<1x128xf32> to vector<128xf32>
    %63 = vector.shape_cast %62 : vector<128xf32> to vector<1x128xf32>
    %64 = vector.broadcast %63 : vector<1x128xf32> to vector<16x128xf32>
    %65 = arith.addf %60, %64 : vector<16x128xf32>
    %cst_31 = arith.constant 0.000000e+00 : f32
    %66 = vector.broadcast %cst_31 : f32 to vector<16x128xf32>
    %67 = arith.maximumf %65, %66 : vector<16x128xf32>
    %68 = arith.truncf %67 : vector<16x128xf32> to vector<16x128xbf16>
    %c0_32 = arith.constant 0 : index
    %c0_33 = arith.constant 0 : index
    %69 = vector.load %arg8[%c0_32, %c0_33] : memref<128x128xbf16, #tpu.memory_space<vmem>>, vector<128x128xbf16>
    %cst_34 = arith.constant dense<0.000000e+00> : vector<16x128xf32>
    %70 = tpu.matmul %68, %69, %cst_34 {dimension_numbers = #tpu.dot_dimension_numbers<[1], [0], [0], [1], [0, 0, 1, 1], [], []>} : vector<16x128xbf16>, vector<128x128xbf16>, vector<16x128xf32> -> vector<16x128xf32>
    %c0_35 = arith.constant 0 : index
    %c0_36 = arith.constant 0 : index
    %71 = vector.load %arg9[%c0_35, %c0_36] : memref<1x128xf32, #tpu.memory_space<vmem>>, vector<1x128xf32>
    %72 = vector.broadcast %71 : vector<1x128xf32> to vector<16x128xf32>
    %73 = arith.addf %70, %72 : vector<16x128xf32>
    %c0_37 = arith.constant 0 : index
    %c0_38 = arith.constant 0 : index
    %74 = vector.load %arg11[%c0_37, %c0_38] : memref<16x128xf32, #tpu.memory_space<vmem>>, vector<16x128xf32>
    tpu.vector_store %arg11[%c0_37, %c0_38], %73 {strides = array<i32>} : memref<16x128xf32, #tpu.memory_space<vmem>>, vector<16x128xf32>,
    return
  }
}

</mosaic_0001>

<llo_original>
// kernel: model_forward.1
$region0: #{model_forward.1}
  #allocation0 [shape = 'u32[]', space=smem, size = 0x4, offset = 0x4, fixed_abs, tag = 'smem constant byte address 0x4 - core index']
  #allocation1 [shape = 'u32[144,128]{1,0:T(1,128)}', space=vmem, size = 0x12000, scoped, tag = 'internal scratch']
  %s0 = inlined_call_operand.vmem [shape: bf16[128,128], index: 0, kind: input, shape index: {}]
  %s1 = inlined_call_operand.vmem [shape: f32[128,128], index: 1, kind: input, shape index: {}]
  %s2 = inlined_call_operand.vmem [shape: bf16[128,128], index: 2, kind: input, shape index: {}]
  %s3 = inlined_call_operand.vmem [shape: bf16[256,128], index: 3, kind: input, shape index: {}]
  %s4 = inlined_call_operand.vmem [shape: bf16[2,256,128], index: 4, kind: input, shape index: {}]
  %s5 = inlined_call_operand.vmem [shape: f32[8,128], index: 5, kind: input, shape index: {}]
  %s6 = inlined_call_operand.vmem [shape: bf16[16,128], index: 6, kind: input, shape index: {}]
  %s7 = inlined_call_operand.vmem [shape: bf16[128,128], index: 7, kind: input, shape index: {}]
  %s8 = inlined_call_operand.vmem [shape: bf16[128,128], index: 8, kind: input, shape index: {}]
  %s9 = inlined_call_operand.vmem [shape: f32[1,128], index: 9, kind: input, shape index: {}]
  %s10 = inlined_call_operand.vmem [shape: f32[128,128], index: 10, kind: output, shape index: {0}]
  %s11 = inlined_call_operand.vmem [shape: f32[16,128], index: 11, kind: output, shape index: {1}]
  %12 = xla_tuple %s10, %s11
  %s13 = sld [smem:[#allocation0]]
  $region58: #{model_forward.1} parent=0
    _
  %s15 = ssub.s32 1, %s13
  %s16 = scalar_select 0, %s15, %s13
  // Predicated region
  $region2: #{model_forward.1} parent=0 // pred_check
    _
  $region3: #{model_forward.1} parent=0 // pred_check_branch
    %18 = sbr.rel (0) target = $region5
  $region4: #{model_forward.1} parent=0 // pred_region
    _
  $region5: #{model_forward.1} parent=0 // pred_fallthru
    _
  // Predicated region
  $region6: #{model_forward.1} parent=0 // pred_check
    _
  $region7: #{model_forward.1} parent=0 // pred_check_branch
    %20 = sbr.rel (0) target = $region9
  $region8: #{model_forward.1} parent=0 // pred_region
    _
  $region9: #{model_forward.1} parent=0 // pred_fallthru
    _
  // Predicated region
  $region10: #{model_forward.1} parent=0 // pred_check
    _
  $region11: #{model_forward.1} parent=0 // pred_check_branch
    %22 = sbr.rel (0) target = $region13
  $region12: #{model_forward.1} parent=0 // pred_region
    _
  $region13: #{model_forward.1} parent=0 // pred_fallthru
    _
  // Predicated region
  $region14: #{model_forward.1} parent=0 // pred_check
    _
  $region15: #{model_forward.1} parent=0 // pred_check_branch
    %24 = sbr.rel (0) target = $region17
  $region16: #{model_forward.1} parent=0 // pred_region
    _
  $region17: #{model_forward.1} parent=0 // pred_fallthru
    _
  // Predicated region
  $region18: #{model_forward.1} parent=0 // pred_check
    _
  $region19: #{model_forward.1} parent=0 // pred_check_branch
    %26 = sbr.rel (0) target = $region21
  $region20: #{model_forward.1} parent=0 // pred_region
    _
  $region21: #{model_forward.1} parent=0 // pred_fallthru
    _
  // Predicated region
  $region22: #{model_forward.1} parent=0 // pred_check
    _
  $region23: #{model_forward.1} parent=0 // pred_check_branch
    %28 = sbr.rel (0) target = $region25
  $region24: #{model_forward.1} parent=0 // pred_region
    _
  $region25: #{model_forward.1} parent=0 // pred_fallthru
    _
  // Predicated region
  $region26: #{model_forward.1} parent=0 // pred_check
    _
  $region27: #{model_forward.1} parent=0 // pred_check_branch
    %30 = sbr.rel (0) target = $region29
  $region28: #{model_forward.1} parent=0 // pred_region
    _
  $region29: #{model_forward.1} parent=0 // pred_fallthru
    _
  // Predicated region
  $region30: #{model_forward.1} parent=0 // pred_check
    _
  $region31: #{model_forward.1} parent=0 // pred_check_branch
    %32 = sbr.rel (0) target = $region33
  $region32: #{model_forward.1} parent=0 // pred_region
    _
  $region33: #{model_forward.1} parent=0 // pred_fallthru
    _
  // Predicated region
  $region34: #{model_forward.1} parent=0 // pred_check
    _
  $region35: #{model_forward.1} parent=0 // pred_check_branch
    %34 = sbr.rel (0) target = $region37
  $region36: #{model_forward.1} parent=0 // pred_region
    _
  $region37: #{model_forward.1} parent=0 // pred_fallthru
    _
  // Predicated region
  $region38: #{model_forward.1} parent=0 // pred_check
    _
  $region39: #{model_forward.1} parent=0 // pred_check_branch
    %36 = sbr.rel (0) target = $region41
  $region40: #{model_forward.1} parent=0 // pred_region
    _
  $region41: #{model_forward.1} parent=0 // pred_fallthru
    _
  %v38 = vld [vmem:[%s0] sm:$0xf]
  %v39 = vld [vmem:[%s0 + $0x4] sm:$0xf]
  %v40 = vld [vmem:[%s0 + $0x8] sm:$0xf]
  %v41 = vld [vmem:[%s0 + $0xc] sm:$0xf]
  %v42 = vld [vmem:[%s0 + $0x10] sm:$0xf]
  %v43 = vld [vmem:[%s0 + $0x14] sm:$0xf]
  %v44 = vld [vmem:[%s0 + $0x18] sm:$0xf]
  %v45 = vld [vmem:[%s0 + $0x1c] sm:$0xf]
  %v46 = vld [vmem:[%s0 + $0x20] sm:$0xf]
  %v47 = vld [vmem:[%s0 + $0x24] sm:$0xf]
  %v48 = vld [vmem:[%s0 + $0x28] sm:$0xf]
  %v49 = vld [vmem:[%s0 + $0x2c] sm:$0xf]
  %v50 = vld [vmem:[%s0 + $0x30] sm:$0xf]
  %v51 = vld [vmem:[%s0 + $0x34] sm:$0xf]
  %v52 = vld [vmem:[%s0 + $0x38] sm:$0xf]
  %v53 = vld [vmem:[%s0 + $0x3c] sm:$0xf]
  %v54 = vld [vmem:[%s1] sm:$0xff]
  %v55 = vld [vmem:[%s1 + $0x8] sm:$0xff]
  %v56 = vld [vmem:[%s1 + $0x10] sm:$0xff]
  %v57 = vld [vmem:[%s1 + $0x18] sm:$0xff]
  %v58 = vld [vmem:[%s1 + $0x20] sm:$0xff]
  %v59 = vld [vmem:[%s1 + $0x28] sm:$0xff]
  %v60 = vld [vmem:[%s1 + $0x30] sm:$0xff]
  %v61 = vld [vmem:[%s1 + $0x38] sm:$0xff]
  %v62 = vld [vmem:[%s1 + $0x40] sm:$0xff]
  %v63 = vld [vmem:[%s1 + $0x48] sm:$0xff]
  %v64 = vld [vmem:[%s1 + $0x50] sm:$0xff]
  %v65 = vld [vmem:[%s1 + $0x58] sm:$0xff]
  %v66 = vld [vmem:[%s1 + $0x60] sm:$0xff]
  %v67 = vld [vmem:[%s1 + $0x68] sm:$0xff]
  %v68 = vld [vmem:[%s1 + $0x70] sm:$0xff]
  %v69 = vld [vmem:[%s1 + $0x78] sm:$0xff]
  %v70 = vld [vmem:[%s5] sm:$0xff]
  %v71 = vpack.c.bf16 %v55, %v54
  %v72 = vpack.c.bf16 %v57, %v56
  %v73 = vpack.c.bf16 %v59, %v58
  %v74 = vpack.c.bf16 %v61, %v60
  %v75 = vpack.c.bf16 %v63, %v62
  %v76 = vpack.c.bf16 %v65, %v64
  %v77 = vpack.c.bf16 %v67, %v66
  %v78 = vpack.c.bf16 %v69, %v68
  %v79 = vld [vmem:[%s2] sm:$0xf]
  %v80 = vld [vmem:[%s2 + $0x4] sm:$0xf]
  %v81 = vld [vmem:[%s2 + $0x8] sm:$0xf]
  %v82 = vld [vmem:[%s2 + $0xc] sm:$0xf]
  %v83 = vld [vmem:[%s2 + $0x10] sm:$0xf]
  %v84 = vld [vmem:[%s2 + $0x14] sm:$0xf]
  %v85 = vld [vmem:[%s2 + $0x18] sm:$0xf]
  %v86 = vld [vmem:[%s2 + $0x1c] sm:$0xf]
  %v87 = vld [vmem:[%s2 + $0x20] sm:$0xf]
  %v88 = vld [vmem:[%s2 + $0x24] sm:$0xf]
  %v89 = vld [vmem:[%s2 + $0x28] sm:$0xf]
  %v90 = vld [vmem:[%s2 + $0x2c] sm:$0xf]
  %v91 = vld [vmem:[%s2 + $0x30] sm:$0xf]
  %v92 = vld [vmem:[%s2 + $0x34] sm:$0xf]
  %v93 = vld [vmem:[%s2 + $0x38] sm:$0xf]
  %v94 = vld [vmem:[%s2 + $0x3c] sm:$0xf]
  %v95 = vlaneseq
  %v96 = vshrl.u32 %v95, 7
  %v97 = vsub.s32 4, %v96
  %v98 = vrot.slane %v70, %v97
  %v115 = vunpack.c.l.b16 %v79
  %v116 = vunpack.c.l.b16 %v80
  %v117 = vunpack.c.l.b16 %v81
  %v118 = vunpack.c.l.b16 %v82
  %v119 = vunpack.c.l.b16 %v83
  %v120 = vunpack.c.l.b16 %v84
  %v121 = vunpack.c.l.b16 %v85
  %v122 = vunpack.c.l.b16 %v86
  %v123 = vunpack.c.l.b16 %v87
  %v124 = vunpack.c.l.b16 %v88
  %v125 = vunpack.c.l.b16 %v89
  %v126 = vunpack.c.l.b16 %v90
  %v127 = vunpack.c.l.b16 %v91
  %v128 = vunpack.c.l.b16 %v92
  %v129 = vunpack.c.l.b16 %v93
  %v130 = vunpack.c.l.b16 %v94
  %v131 = vpack.c.b16 %v116, %v115
  %v132 = vpack.c.b16 %v118, %v117
  %v133 = vpack.c.b16 %v120, %v119
  %v134 = vpack.c.b16 %v122, %v121
  %v135 = vpack.c.b16 %v124, %v123
  %v136 = vpack.c.b16 %v126, %v125
  %v137 = vpack.c.b16 %v128, %v127
  %v138 = vpack.c.b16 %v130, %v129
  %147 = vmatprep.subr.bf16.mxu0 0
  %148 = vmatpush1.bf16.msra.mxu0 %v131
  %149 = vmatprep.subr.bf16.mxu0 0
  %150 = vmatpush1.bf16.msra.mxu0 %v132
  %151 = vmatprep.subr.bf16.mxu0 0
  %152 = vmatpush1.bf16.msra.mxu0 %v133
  %153 = vmatprep.subr.bf16.mxu0 0
  %154 = vmatpush1.bf16.msra.mxu0 %v134
  %155 = vmatprep.subr.bf16.mxu0 0
  %156 = vmatpush1.bf16.msra.mxu0 %v135
  %157 = vmatprep.subr.bf16.mxu0 0
  %158 = vmatpush1.bf16.msra.mxu0 %v136
  %159 = vmatprep.subr.bf16.mxu0 0
  %160 = vmatpush1.bf16.msra.mxu0 %v137
  %161 = vmatprep.subr.bf16.mxu0 0
  %162 = vmatpush1.bf16.msra.mxu0 %v138
  %163 = vmatprep.subr.bf16.mxu0 0
  %164 = vmatpush1.bf16.msra.mxu0 0
  %165 = vmatprep.subr.bf16.mxu0 0
  %166 = vmatpush1.bf16.msra.mxu0 0
  %167 = vmatprep.subr.bf16.mxu0 0
  %168 = vmatpush1.bf16.msra.mxu0 0
  %169 = vmatprep.subr.bf16.mxu0 0
  %170 = vmatpush1.bf16.msra.mxu0 0
  %171 = vmatprep.subr.bf16.mxu0 0
  %172 = vmatpush1.bf16.msra.mxu0 0
  %173 = vmatprep.subr.bf16.mxu0 0
  %174 = vmatpush1.bf16.msra.mxu0 0
  %175 = vmatprep.subr.bf16.mxu0 0
  %176 = vmatpush1.bf16.msra.mxu0 0
  %177 = vmatprep.subr.bf16.mxu0 0
  %178 = vmatpush1.bf16.msra.mxu0 0
  %179 = vmatprep.mubr.bf16.mxu0 0
  %180 = vmatmul.mubr.bf16.gmra.mrb[0].mxu0 %v71
  %v181 = vpop.f32.mrb[0].mxu0
  %v182 = vadd.f32 %v98, %v181
  %v183 = vpop.f32.mrb[0].mxu0
  %v184 = vpop.f32.mrb[0].mxu0
  %v185 = vadd.f32 %v98, %v184
  %v186 = vpop.f32.mrb[0].mxu0
  %187 = vmatprep.mubr.bf16.mxu0 0
  %188 = vmatmul.mubr.bf16.gmra.mrb[0].mxu0 %v72
  %v189 = vpop.f32.mrb[0].mxu0
  %v190 = vadd.f32 %v98, %v189
  %v191 = vpop.f32.mrb[0].mxu0
  %v192 = vpop.f32.mrb[0].mxu0
  %v193 = vadd.f32 %v98, %v192
  %v194 = vpop.f32.mrb[0].mxu0
  %195 = vmatprep.mubr.bf16.mxu0 0
  %196 = vmatmul.mubr.bf16.gmra.mrb[0].mxu0 %v73
  %v197 = vpop.f32.mrb[0].mxu0
  %v198 = vadd.f32 %v98, %v197
  %v199 = vpop.f32.mrb[0].mxu0
  %v200 = vpop.f32.mrb[0].mxu0
  %v201 = vadd.f32 %v98, %v200
  %v202 = vpop.f32.mrb[0].mxu0
  %203 = vmatprep.mubr.bf16.mxu0 0
  %204 = vmatmul.mubr.bf16.gmra.mrb[0].mxu0 %v74
  %v205 = vpop.f32.mrb[0].mxu0
  %v206 = vadd.f32 %v98, %v205
  %v207 = vpop.f32.mrb[0].mxu0
  %v208 = vpop.f32.mrb[0].mxu0
  %v209 = vadd.f32 %v98, %v208
  %v210 = vpop.f32.mrb[0].mxu0
  %211 = vmatprep.mubr.bf16.mxu0 0
  %212 = vmatmul.mubr.bf16.gmra.mrb[0].mxu0 %v75
  %v213 = vpop.f32.mrb[0].mxu0
  %v214 = vadd.f32 %v98, %v213
  %v215 = vpop.f32.mrb[0].mxu0
  %v216 = vpop.f32.mrb[0].mxu0
  %v217 = vadd.f32 %v98, %v216
  %v218 = vpop.f32.mrb[0].mxu0
  %219 = vmatprep.mubr.bf16.mxu0 0
  %220 = vmatmul.mubr.bf16.gmra.mrb[0].mxu0 %v76
  %v221 = vpop.f32.mrb[0].mxu0
  %v222 = vadd.f32 %v98, %v221
  %v223 = vpop.f32.mrb[0].mxu0
  %v224 = vpop.f32.mrb[0].mxu0
  %v225 = vadd.f32 %v98, %v224
  %v226 = vpop.f32.mrb[0].mxu0
  %227 = vmatprep.mubr.bf16.mxu0 0
  %228 = vmatmul.mubr.bf16.gmra.mrb[0].mxu0 %v77
  %v229 = vpop.f32.mrb[0].mxu0
  %v230 = vadd.f32 %v98, %v229
  %v231 = vpop.f32.mrb[0].mxu0
  %v232 = vpop.f32.mrb[0].mxu0
  %v233 = vadd.f32 %v98, %v232
  %v234 = vpop.f32.mrb[0].mxu0
  %235 = vmatprep.mubr.bf16.mxu0 0
  %236 = vmatmul.mubr.bf16.gmra.mrb[0].mxu0 %v78
  %v237 = vpop.f32.mrb[0].mxu0
  %v238 = vadd.f32 %v98, %v237
  %v239 = vpop.f32.mrb[0].mxu0
  %v240 = vpop.f32.mrb[0].mxu0
  %v241 = vadd.f32 %v98, %v240
  %v242 = vpop.f32.mrb[0].mxu0
  %243 = vdwg.mxu0
  %v260 = vunpack.c.l.b16 %v38
  %v261 = vunpack.c.l.b16 %v39
  %v262 = vunpack.c.l.b16 %v40
  %v263 = vunpack.c.l.b16 %v41
  %v264 = vunpack.c.l.b16 %v42
  %v265 = vunpack.c.l.b16 %v43
  %v266 = vunpack.c.l.b16 %v44
  %v267 = vunpack.c.l.b16 %v45
  %v268 = vunpack.c.l.b16 %v46
  %v269 = vunpack.c.l.b16 %v47
  %v270 = vunpack.c.l.b16 %v48
  %v271 = vunpack.c.l.b16 %v49
  %v272 = vunpack.c.l.b16 %v50
  %v273 = vunpack.c.l.b16 %v51
  %v274 = vunpack.c.l.b16 %v52
  %v275 = vunpack.c.l.b16 %v53
  %v276 = vpack.c.b16 %v261, %v260
  %v277 = vpack.c.b16 %v263, %v262
  %v278 = vpack.c.b16 %v265, %v264
  %v279 = vpack.c.b16 %v267, %v266
  %v280 = vpack.c.b16 %v269, %v268
  %v281 = vpack.c.b16 %v271, %v270
  %v282 = vpack.c.b16 %v273, %v272
  %v283 = vpack.c.b16 %v275, %v274
  %292 = vmatprep.subr.bf16.mxu0 0
  %293 = vmatpush1.bf16.msra.mxu0 %v71
  %294 = vmatprep.subr.bf16.mxu0 0
  %295 = vmatpush1.bf16.msra.mxu0 %v72
  %296 = vmatprep.subr.bf16.mxu0 0
  %297 = vmatpush1.bf16.msra.mxu0 %v73
  %298 = vmatprep.subr.bf16.mxu0 0
  %299 = vmatpush1.bf16.msra.mxu0 %v74
  %300 = vmatprep.subr.bf16.mxu0 0
  %301 = vmatpush1.bf16.msra.mxu0 %v75
  %302 = vmatprep.subr.bf16.mxu0 0
  %303 = vmatpush1.bf16.msra.mxu0 %v76
  %304 = vmatprep.subr.bf16.mxu0 0
  %305 = vmatpush1.bf16.msra.mxu0 %v77
  %306 = vmatprep.subr.bf16.mxu0 0
  %307 = vmatpush1.bf16.msra.mxu0 %v78
  %308 = vmatprep.subr.bf16.mxu0 0
  %309 = vmatpush1.bf16.msra.mxu0 0
  %310 = vmatprep.subr.bf16.mxu0 0
  %311 = vmatpush1.bf16.msra.mxu0 0
  %312 = vmatprep.subr.bf16.mxu0 0
  %313 = vmatpush1.bf16.msra.mxu0 0
  %314 = vmatprep.subr.bf16.mxu0 0
  %315 = vmatpush1.bf16.msra.mxu0 0
  %316 = vmatprep.subr.bf16.mxu0 0
  %317 = vmatpush1.bf16.msra.mxu0 0
  %318 = vmatprep.subr.bf16.mxu0 0
  %319 = vmatpush1.bf16.msra.mxu0 0
  %320 = vmatprep.subr.bf16.mxu0 0
  %321 = vmatpush1.bf16.msra.mxu0 0
  %322 = vmatprep.subr.bf16.mxu0 0
  %323 = vmatpush1.bf16.msra.mxu0 0
  %324 = vmatprep.mubr.bf16.mxu0 0
  %325 = vmatmul.mubr.bf16.gmra.mrb[0].mxu0 %v276
  %v326 = vpop.f32.mrb[0].mxu0
  %v327 = vadd.f32 0.0, %v326
  %v328 = vpop.f32.mrb[0].mxu0
  %v329 = vpop.f32.mrb[0].mxu0
  %v330 = vadd.f32 0.0, %v329
  %v331 = vpop.f32.mrb[0].mxu0
  %332 = vmatprep.mubr.bf16.mxu0 0
  %333 = vmatmul.mubr.bf16.gmra.mrb[0].mxu0 %v277
  %v334 = vpop.f32.mrb[0].mxu0
  %v335 = vadd.f32 0.0, %v334
  %v336 = vpop.f32.mrb[0].mxu0
  %v337 = vpop.f32.mrb[0].mxu0
  %v338 = vadd.f32 0.0, %v337
  %v339 = vpop.f32.mrb[0].mxu0
  %340 = vmatprep.mubr.bf16.mxu0 0
  %341 = vmatmul.mubr.bf16.gmra.mrb[0].mxu0 %v278
  %v342 = vpop.f32.mrb[0].mxu0
  %v343 = vadd.f32 0.0, %v342
  %v344 = vpop.f32.mrb[0].mxu0
  %v345 = vpop.f32.mrb[0].mxu0
  %v346 = vadd.f32 0.0, %v345
  %v347 = vpop.f32.mrb[0].mxu0
  %348 = vmatprep.mubr.bf16.mxu0 0
  %349 = vmatmul.mubr.bf16.gmra.mrb[0].mxu0 %v279
  %v350 = vpop.f32.mrb[0].mxu0
  %v351 = vadd.f32 0.0, %v350
  %v352 = vpop.f32.mrb[0].mxu0
  %v353 = vpop.f32.mrb[0].mxu0
  %v354 = vadd.f32 0.0, %v353
  %v355 = vpop.f32.mrb[0].mxu0
  %356 = vmatprep.mubr.bf16.mxu0 0
  %357 = vmatmul.mubr.bf16.gmra.mrb[0].mxu0 %v280
  %v358 = vpop.f32.mrb[0].mxu0
  %v359 = vadd.f32 0.0, %v358
  %v360 = vpop.f32.mrb[0].mxu0
  %v361 = vpop.f32.mrb[0].mxu0
  %v362 = vadd.f32 0.0, %v361
  %v363 = vpop.f32.mrb[0].mxu0
  %364 = vmatprep.mubr.bf16.mxu0 0
  %365 = vmatmul.mubr.bf16.gmra.mrb[0].mxu0 %v281
  %v366 = vpop.f32.mrb[0].mxu0
  %v367 = vadd.f32 0.0, %v366
  %v368 = vpop.f32.mrb[0].mxu0
  %v369 = vpop.f32.mrb[0].mxu0
  %v370 = vadd.f32 0.0, %v369
  %v371 = vpop.f32.mrb[0].mxu0
  %372 = vmatprep.mubr.bf16.mxu0 0
  %373 = vmatmul.mubr.bf16.gmra.mrb[0].mxu0 %v282
  %v374 = vpop.f32.mrb[0].mxu0
  %v375 = vadd.f32 0.0, %v374
  %v376 = vpop.f32.mrb[0].mxu0
  %v377 = vpop.f32.mrb[0].mxu0
  %v378 = vadd.f32 0.0, %v377
  %v379 = vpop.f32.mrb[0].mxu0
  %380 = vmatprep.mubr.bf16.mxu0 0
  %381 = vmatmul.mubr.bf16.gmra.mrb[0].mxu0 %v283
  %v382 = vpop.f32.mrb[0].mxu0
  %v383 = vadd.f32 0.0, %v382
  %v384 = vpop.f32.mrb[0].mxu0
  %v385 = vpop.f32.mrb[0].mxu0
  %v386 = vadd.f32 0.0, %v385
  %v387 = vpop.f32.mrb[0].mxu0
  %388 = vdwg.mxu0
  %v389 = vpack.c.bf16 %v330, %v327
  %v390 = vpack.c.bf16 %v338, %v335
  %v391 = vpack.c.bf16 %v346, %v343
  %v392 = vpack.c.bf16 %v354, %v351
  %v393 = vpack.c.bf16 %v362, %v359
  %v394 = vpack.c.bf16 %v370, %v367
  %v395 = vpack.c.bf16 %v378, %v375
  %v396 = vpack.c.bf16 %v386, %v383
  %v397 = vld [vmem:[%s3] sm:$0xf]
  %v398 = vld [vmem:[%s3 + $0x4] sm:$0xf]
  %v399 = vld [vmem:[%s3 + $0x8] sm:$0xf]
  %v400 = vld [vmem:[%s3 + $0xc] sm:$0xf]
  %v401 = vld [vmem:[%s3 + $0x10] sm:$0xf]
  %v402 = vld [vmem:[%s3 + $0x14] sm:$0xf]
  %v403 = vld [vmem:[%s3 + $0x18] sm:$0xf]
  %v404 = vld [vmem:[%s3 + $0x1c] sm:$0xf]
  %v405 = vld [vmem:[%s3 + $0x20] sm:$0xf]
  %v406 = vld [vmem:[%s3 + $0x24] sm:$0xf]
  %v407 = vld [vmem:[%s3 + $0x28] sm:$0xf]
  %v408 = vld [vmem:[%s3 + $0x2c] sm:$0xf]
  %v409 = vld [vmem:[%s3 + $0x30] sm:$0xf]
  %v410 = vld [vmem:[%s3 + $0x34] sm:$0xf]
  %v411 = vld [vmem:[%s3 + $0x38] sm:$0xf]
  %v412 = vld [vmem:[%s3 + $0x3c] sm:$0xf]
  %v413 = vld [vmem:[%s3 + $0x40] sm:$0xf]
  %v414 = vld [vmem:[%s3 + $0x44] sm:$0xf]
  %v415 = vld [vmem:[%s3 + $0x48] sm:$0xf]
  %v416 = vld [vmem:[%s3 + $0x4c] sm:$0xf]
  %v417 = vld [vmem:[%s3 + $0x50] sm:$0xf]
  %v418 = vld [vmem:[%s3 + $0x54] sm:$0xf]
  %v419 = vld [vmem:[%s3 + $0x58] sm:$0xf]
  %v420 = vld [vmem:[%s3 + $0x5c] sm:$0xf]
  %v421 = vld [vmem:[%s3 + $0x60] sm:$0xf]
  %v422 = vld [vmem:[%s3 + $0x64] sm:$0xf]
  %v423 = vld [vmem:[%s3 + $0x68] sm:$0xf]
  %v424 = vld [vmem:[%s3 + $0x6c] sm:$0xf]
  %v425 = vld [vmem:[%s3 + $0x70] sm:$0xf]
  %v426 = vld [vmem:[%s3 + $0x74] sm:$0xf]
  %v427 = vld [vmem:[%s3 + $0x78] sm:$0xf]
  %v428 = vld [vmem:[%s3 + $0x7c] sm:$0xf]
  %v429 = vlaneseq
  %v430 = vshrl.u32 %v429, 7
  %v431 = vsub.s32 0, %v430
  %v432 = vrot.slane %v70, %v431
  %v465 = vunpack.c.l.b16 %v397
  %v466 = vunpack.c.l.b16 %v398
  %v467 = vunpack.c.l.b16 %v399
  %v468 = vunpack.c.l.b16 %v400
  %v469 = vunpack.c.l.b16 %v401
  %v470 = vunpack.c.l.b16 %v402
  %v471 = vunpack.c.l.b16 %v403
  %v472 = vunpack.c.l.b16 %v404
  %v473 = vunpack.c.l.b16 %v405
  %v474 = vunpack.c.l.b16 %v406
  %v475 = vunpack.c.l.b16 %v407
  %v476 = vunpack.c.l.b16 %v408
  %v477 = vunpack.c.l.b16 %v409
  %v478 = vunpack.c.l.b16 %v410
  %v479 = vunpack.c.l.b16 %v411
  %v480 = vunpack.c.l.b16 %v412
  %v481 = vunpack.c.l.b16 %v413
  %v482 = vunpack.c.l.b16 %v414
  %v483 = vunpack.c.l.b16 %v415
  %v484 = vunpack.c.l.b16 %v416
  %v485 = vunpack.c.l.b16 %v417
  %v486 = vunpack.c.l.b16 %v418
  %v487 = vunpack.c.l.b16 %v419
  %v488 = vunpack.c.l.b16 %v420
  %v489 = vunpack.c.l.b16 %v421
  %v490 = vunpack.c.l.b16 %v422
  %v491 = vunpack.c.l.b16 %v423
  %v492 = vunpack.c.l.b16 %v424
  %v493 = vunpack.c.l.b16 %v425
  %v494 = vunpack.c.l.b16 %v426
  %v495 = vunpack.c.l.b16 %v427
  %v496 = vunpack.c.l.b16 %v428
  %v497 = vpack.c.b16 %v466, %v465
  %v498 = vpack.c.b16 %v468, %v467
  %v499 = vpack.c.b16 %v470, %v469
  %v500 = vpack.c.b16 %v472, %v471
  %v501 = vpack.c.b16 %v474, %v473
  %v502 = vpack.c.b16 %v476, %v475
  %v503 = vpack.c.b16 %v478, %v477
  %v504 = vpack.c.b16 %v480, %v479
  %v505 = vpack.c.b16 %v482, %v481
  %v506 = vpack.c.b16 %v484, %v483
  %v507 = vpack.c.b16 %v486, %v485
  %v508 = vpack.c.b16 %v488, %v487
  %v509 = vpack.c.b16 %v490, %v489
  %v510 = vpack.c.b16 %v492, %v491
  %v511 = vpack.c.b16 %v494, %v493
  %v512 = vpack.c.b16 %v496, %v495
  %529 = vmatprep.subr.bf16.mxu0 0
  %530 = vmatpush1.bf16.msra.mxu0 %v497
  %531 = vmatprep.subr.bf16.mxu0 0
  %532 = vmatpush1.bf16.msra.mxu0 %v498
  %533 = vmatprep.subr.bf16.mxu0 0
  %534 = vmatpush1.bf16.msra.mxu0 %v499
  %535 = vmatprep.subr.bf16.mxu0 0
  %536 = vmatpush1.bf16.msra.mxu0 %v500
  %537 = vmatprep.subr.bf16.mxu0 0
  %538 = vmatpush1.bf16.msra.mxu0 %v501
  %539 = vmatprep.subr.bf16.mxu0 0
  %540 = vmatpush1.bf16.msra.mxu0 %v502
  %541 = vmatprep.subr.bf16.mxu0 0
  %542 = vmatpush1.bf16.msra.mxu0 %v503
  %543 = vmatprep.subr.bf16.mxu0 0
  %544 = vmatpush1.bf16.msra.mxu0 %v504
  %545 = vmatprep.subr.bf16.mxu0 0
  %546 = vmatpush1.bf16.msra.mxu0 %v505
  %547 = vmatprep.subr.bf16.mxu0 0
  %548 = vmatpush1.bf16.msra.mxu0 %v506
  %549 = vmatprep.subr.bf16.mxu0 0
  %550 = vmatpush1.bf16.msra.mxu0 %v507
  %551 = vmatprep.subr.bf16.mxu0 0
  %552 = vmatpush1.bf16.msra.mxu0 %v508
  %553 = vmatprep.subr.bf16.mxu0 0
  %554 = vmatpush1.bf16.msra.mxu0 %v509
  %555 = vmatprep.subr.bf16.mxu0 0
  %556 = vmatpush1.bf16.msra.mxu0 %v510
  %557 = vmatprep.subr.bf16.mxu0 0
  %558 = vmatpush1.bf16.msra.mxu0 %v511
  %559 = vmatprep.subr.bf16.mxu0 0
  %560 = vmatpush1.bf16.msra.mxu0 %v512
  %561 = vmatprep.mubr.bf16.mxu0 %v71
  %562 = vmatmul.mubr.bf16.gmra.mrb[0].mxu0 %v389
  %v563 = vpop.f32.mrb[0].mxu0
  %v564 = vadd.f32 %v432, %v563
  %v565 = vpop.f32.mrb[0].mxu0
  %v566 = vpop.f32.mrb[0].mxu0
  %v567 = vadd.f32 %v432, %v566
  %v568 = vpop.f32.mrb[0].mxu0
  %569 = vmatprep.mubr.bf16.mxu0 %v72
  %570 = vmatmul.mubr.bf16.gmra.mrb[0].mxu0 %v390
  %v571 = vpop.f32.mrb[0].mxu0
  %v572 = vadd.f32 %v432, %v571
  %v573 = vpop.f32.mrb[0].mxu0
  %v574 = vpop.f32.mrb[0].mxu0
  %v575 = vadd.f32 %v432, %v574
  %v576 = vpop.f32.mrb[0].mxu0
  %577 = vmatprep.mubr.bf16.mxu0 %v73
  %578 = vmatmul.mubr.bf16.gmra.mrb[0].mxu0 %v391
  %v579 = vpop.f32.mrb[0].mxu0
  %v580 = vadd.f32 %v432, %v579
  %v581 = vpop.f32.mrb[0].mxu0
  %v582 = vpop.f32.mrb[0].mxu0
  %v583 = vadd.f32 %v432, %v582
  %v584 = vpop.f32.mrb[0].mxu0
  %585 = vmatprep.mubr.bf16.mxu0 %v74
  %586 = vmatmul.mubr.bf16.gmra.mrb[0].mxu0 %v392
  %v587 = vpop.f32.mrb[0].mxu0
  %v588 = vadd.f32 %v432, %v587
  %v589 = vpop.f32.mrb[0].mxu0
  %v590 = vpop.f32.mrb[0].mxu0
  %v591 = vadd.f32 %v432, %v590
  %v592 = vpop.f32.mrb[0].mxu0
  %593 = vmatprep.mubr.bf16.mxu0 %v75
  %594 = vmatmul.mubr.bf16.gmra.mrb[0].mxu0 %v393
  %v595 = vpop.f32.mrb[0].mxu0
  %v596 = vadd.f32 %v432, %v595
  %v597 = vpop.f32.mrb[0].mxu0
  %v598 = vpop.f32.mrb[0].mxu0
  %v599 = vadd.f32 %v432, %v598
  %v600 = vpop.f32.mrb[0].mxu0
  %601 = vmatprep.mubr.bf16.mxu0 %v76
  %602 = vmatmul.mubr.bf16.gmra.mrb[0].mxu0 %v394
  %v603 = vpop.f32.mrb[0].mxu0
  %v604 = vadd.f32 %v432, %v603
  %v605 = vpop.f32.mrb[0].mxu0
  %v606 = vpop.f32.mrb[0].mxu0
  %v607 = vadd.f32 %v432, %v606
  %v608 = vpop.f32.mrb[0].mxu0
  %609 = vmatprep.mubr.bf16.mxu0 %v77
  %610 = vmatmul.mubr.bf16.gmra.mrb[0].mxu0 %v395
  %v611 = vpop.f32.mrb[0].mxu0
  %v612 = vadd.f32 %v432, %v611
  %v613 = vpop.f32.mrb[0].mxu0
  %v614 = vpop.f32.mrb[0].mxu0
  %v615 = vadd.f32 %v432, %v614
  %v616 = vpop.f32.mrb[0].mxu0
  %617 = vmatprep.mubr.bf16.mxu0 %v78
  %618 = vmatmul.mubr.bf16.gmra.mrb[0].mxu0 %v396
  %v619 = vpop.f32.mrb[0].mxu0
  %v620 = vadd.f32 %v432, %v619
  %v621 = vpop.f32.mrb[0].mxu0
  %v622 = vpop.f32.mrb[0].mxu0
  %v623 = vadd.f32 %v432, %v622
  %v624 = vpop.f32.mrb[0].mxu0
  %625 = vdwg.mxu0
  %v626 = vmax.f32 %v564, 0.0
  %v627 = vmax.f32 %v567, 0.0
  %v628 = vmax.f32 %v572, 0.0
  %v629 = vmax.f32 %v575, 0.0
  %v630 = vmax.f32 %v580, 0.0
  %v631 = vmax.f32 %v583, 0.0
  %v632 = vmax.f32 %v588, 0.0
  %v633 = vmax.f32 %v591, 0.0
  %v634 = vmax.f32 %v596, 0.0
  %v635 = vmax.f32 %v599, 0.0
  %v636 = vmax.f32 %v604, 0.0
  %v637 = vmax.f32 %v607, 0.0
  %v638 = vmax.f32 %v612, 0.0
  %v639 = vmax.f32 %v615, 0.0
  %v640 = vmax.f32 %v620, 0.0
  %v641 = vmax.f32 %v623, 0.0
  %v642 = vadd.f32 %v626, %v182
  %v643 = vadd.f32 %v627, %v185
  %v644 = vadd.f32 %v628, %v190
  %v645 = vadd.f32 %v629, %v193
  %v646 = vadd.f32 %v630, %v198
  %v647 = vadd.f32 %v631, %v201
  %v648 = vadd.f32 %v632, %v206
  %v649 = vadd.f32 %v633, %v209
  %v650 = vadd.f32 %v634, %v214
  %v651 = vadd.f32 %v635, %v217
  %v652 = vadd.f32 %v636, %v222
  %v653 = vadd.f32 %v637, %v225
  %v654 = vadd.f32 %v638, %v230
  %v655 = vadd.f32 %v639, %v233
  %v656 = vadd.f32 %v640, %v238
  %v657 = vadd.f32 %v641, %v241
  %v658 = vpack.c.bf16 %v643, %v642
  %v659 = vpack.c.bf16 %v645, %v644
  %v660 = vpack.c.bf16 %v647, %v646
  %v661 = vpack.c.bf16 %v649, %v648
  %v662 = vpack.c.bf16 %v651, %v650
  %v663 = vpack.c.bf16 %v653, %v652
  %v664 = vpack.c.bf16 %v655, %v654
  %v665 = vpack.c.bf16 %v657, %v656
  %666 = vmatprep.subr.bf16.mxu0 0
  %667 = vmatpush1.bf16.msra.mxu0 %v658
  %668 = vmatprep.subr.bf16.mxu0 0
  %669 = vmatpush1.bf16.msra.mxu0 %v659
  %670 = vmatprep.subr.bf16.mxu0 0
  %671 = vmatpush1.bf16.msra.mxu0 %v660
  %672 = vmatprep.subr.bf16.mxu0 0
  %673 = vmatpush1.bf16.msra.mxu0 %v661
  %674 = vmatprep.subr.bf16.mxu0 0
  %675 = vmatpush1.bf16.msra.mxu0 %v662
  %676 = vmatprep.subr.bf16.mxu0 0
  %677 = vmatpush1.bf16.msra.mxu0 %v663
  %678 = vmatprep.subr.bf16.mxu0 0
  %679 = vmatpush1.bf16.msra.mxu0 %v664
  %680 = vmatprep.subr.bf16.mxu0 0
  %681 = vmatpush1.bf16.msra.mxu0 %v665
  %682 = vmatprep.subr.bf16.mxu0 0
  %683 = vmatpush1.bf16.msra.mxu0 0
  %684 = vmatprep.subr.bf16.mxu0 0
  %685 = vmatpush1.bf16.msra.mxu0 0
  %686 = vmatprep.subr.bf16.mxu0 0
  %687 = vmatpush1.bf16.msra.mxu0 0
  %688 = vmatprep.subr.bf16.mxu0 0
  %689 = vmatpush1.bf16.msra.mxu0 0
  %690 = vmatprep.subr.bf16.mxu0 0
  %691 = vmatpush1.bf16.msra.mxu0 0
  %692 = vmatprep.subr.bf16.mxu0 0
  %693 = vmatpush1.bf16.msra.mxu0 0
  %694 = vmatprep.subr.bf16.mxu0 0
  %695 = vmatpush1.bf16.msra.mxu0 0
  %696 = vmatprep.subr.bf16.mxu0 0
  %697 = vmatpush1.bf16.msra.mxu0 0
  %698 = vmatprep.mubr.bf16.mxu0 0
  %699 = vmatmul.mubr.bf16.gmra.mrb[0].mxu0 %v276
  %v700 = vpop.f32.mrb[0].mxu0
  %v701 = vadd.f32 0.0, %v700
  %v702 = vpop.f32.mrb[0].mxu0
  %v703 = vpop.f32.mrb[0].mxu0
  %v704 = vadd.f32 0.0, %v703
  %v705 = vpop.f32.mrb[0].mxu0
  %706 = vmatprep.mubr.bf16.mxu0 0
  %707 = vmatmul.mubr.bf16.gmra.mrb[0].mxu0 %v277
  %v708 = vpop.f32.mrb[0].mxu0
  %v709 = vadd.f32 0.0, %v708
  %v710 = vpop.f32.mrb[0].mxu0
  %v711 = vpop.f32.mrb[0].mxu0
  %v712 = vadd.f32 0.0, %v711
  %v713 = vpop.f32.mrb[0].mxu0
  %714 = vmatprep.mubr.bf16.mxu0 0
  %715 = vmatmul.mubr.bf16.gmra.mrb[0].mxu0 %v278
  %v716 = vpop.f32.mrb[0].mxu0
  %v717 = vadd.f32 0.0, %v716
  %v718 = vpop.f32.mrb[0].mxu0
  %v719 = vpop.f32.mrb[0].mxu0
  %v720 = vadd.f32 0.0, %v719
  %v721 = vpop.f32.mrb[0].mxu0
  %722 = vmatprep.mubr.bf16.mxu0 0
  %723 = vmatmul.mubr.bf16.gmra.mrb[0].mxu0 %v279
  %v724 = vpop.f32.mrb[0].mxu0
  %v725 = vadd.f32 0.0, %v724
  %v726 = vpop.f32.mrb[0].mxu0
  %v727 = vpop.f32.mrb[0].mxu0
  %v728 = vadd.f32 0.0, %v727
  %v729 = vpop.f32.mrb[0].mxu0
  %730 = vmatprep.mubr.bf16.mxu0 0
  %731 = vmatmul.mubr.bf16.gmra.mrb[0].mxu0 %v280
  %v732 = vpop.f32.mrb[0].mxu0
  %v733 = vadd.f32 0.0, %v732
  %v734 = vpop.f32.mrb[0].mxu0
  %v735 = vpop.f32.mrb[0].mxu0
  %v736 = vadd.f32 0.0, %v735
  %v737 = vpop.f32.mrb[0].mxu0
  %738 = vmatprep.mubr.bf16.mxu0 0
  %739 = vmatmul.mubr.bf16.gmra.mrb[0].mxu0 %v281
  %v740 = vpop.f32.mrb[0].mxu0
  %v741 = vadd.f32 0.0, %v740
  %v742 = vpop.f32.mrb[0].mxu0
  %v743 = vpop.f32.mrb[0].mxu0
  %v744 = vadd.f32 0.0, %v743
  %v745 = vpop.f32.mrb[0].mxu0
  %746 = vmatprep.mubr.bf16.mxu0 0
  %747 = vmatmul.mubr.bf16.gmra.mrb[0].mxu0 %v282
  %v748 = vpop.f32.mrb[0].mxu0
  %v749 = vadd.f32 0.0, %v748
  %v750 = vpop.f32.mrb[0].mxu0
  %v751 = vpop.f32.mrb[0].mxu0
  %v752 = vadd.f32 0.0, %v751
  %v753 = vpop.f32.mrb[0].mxu0
  %754 = vmatprep.mubr.bf16.mxu0 0
  %755 = vmatmul.mubr.bf16.gmra.mrb[0].mxu0 %v283
  %v756 = vpop.f32.mrb[0].mxu0
  %v757 = vadd.f32 0.0, %v756
  %v758 = vpop.f32.mrb[0].mxu0
  %v759 = vpop.f32.mrb[0].mxu0
  %v760 = vadd.f32 0.0, %v759
  %v761 = vpop.f32.mrb[0].mxu0
  %762 = vdwg.mxu0
  %v763 = vpack.c.bf16 %v704, %v701
  %v764 = vpack.c.bf16 %v712, %v709
  %v765 = vpack.c.bf16 %v720, %v717
  %v766 = vpack.c.bf16 %v728, %v725
  %v767 = vpack.c.bf16 %v736, %v733
  %v768 = vpack.c.bf16 %v744, %v741
  %v769 = vpack.c.bf16 %v752, %v749
  %v770 = vpack.c.bf16 %v760, %v757
  %v771 = vld [vmem:[%s4] sm:$0xf]
  %v772 = vld [vmem:[%s4 + $0x4] sm:$0xf]
  %v773 = vld [vmem:[%s4 + $0x8] sm:$0xf]
  %v774 = vld [vmem:[%s4 + $0xc] sm:$0xf]
  %v775 = vld [vmem:[%s4 + $0x10] sm:$0xf]
  %v776 = vld [vmem:[%s4 + $0x14] sm:$0xf]
  %v777 = vld [vmem:[%s4 + $0x18] sm:$0xf]
  %v778 = vld [vmem:[%s4 + $0x1c] sm:$0xf]
  %v779 = vld [vmem:[%s4 + $0x20] sm:$0xf]
  %v780 = vld [vmem:[%s4 + $0x24] sm:$0xf]
  %v781 = vld [vmem:[%s4 + $0x28] sm:$0xf]
  %v782 = vld [vmem:[%s4 + $0x2c] sm:$0xf]
  %v783 = vld [vmem:[%s4 + $0x30] sm:$0xf]
  %v784 = vld [vmem:[%s4 + $0x34] sm:$0xf]
  %v785 = vld [vmem:[%s4 + $0x38] sm:$0xf]
  %v786 = vld [vmem:[%s4 + $0x3c] sm:$0xf]
  %v787 = vld [vmem:[%s4 + $0x40] sm:$0xf]
  %v788 = vld [vmem:[%s4 + $0x44] sm:$0xf]
  %v789 = vld [vmem:[%s4 + $0x48] sm:$0xf]
  %v790 = vld [vmem:[%s4 + $0x4c] sm:$0xf]
  %v791 = vld [vmem:[%s4 + $0x50] sm:$0xf]
  %v792 = vld [vmem:[%s4 + $0x54] sm:$0xf]
  %v793 = vld [vmem:[%s4 + $0x58] sm:$0xf]
  %v794 = vld [vmem:[%s4 + $0x5c] sm:$0xf]
  %v795 = vld [vmem:[%s4 + $0x60] sm:$0xf]
  %v796 = vld [vmem:[%s4 + $0x64] sm:$0xf]
  %v797 = vld [vmem:[%s4 + $0x68] sm:$0xf]
  %v798 = vld [vmem:[%s4 + $0x6c] sm:$0xf]
  %v799 = vld [vmem:[%s4 + $0x70] sm:$0xf]
  %v800 = vld [vmem:[%s4 + $0x74] sm:$0xf]
  %v801 = vld [vmem:[%s4 + $0x78] sm:$0xf]
  %v802 = vld [vmem:[%s4 + $0x7c] sm:$0xf]
  %v803 = vlaneseq
  %v804 = vshrl.u32 %v803, 7
  %v805 = vsub.s32 1, %v804
  %v806 = vrot.slane %v70, %v805
  %v839 = vunpack.c.l.b16 %v771
  %v840 = vunpack.c.l.b16 %v772
  %v841 = vunpack.c.l.b16 %v773
  %v842 = vunpack.c.l.b16 %v774
  %v843 = vunpack.c.l.b16 %v775
  %v844 = vunpack.c.l.b16 %v776
  %v845 = vunpack.c.l.b16 %v777
  %v846 = vunpack.c.l.b16 %v778
  %v847 = vunpack.c.l.b16 %v779
  %v848 = vunpack.c.l.b16 %v780
  %v849 = vunpack.c.l.b16 %v781
  %v850 = vunpack.c.l.b16 %v782
  %v851 = vunpack.c.l.b16 %v783
  %v852 = vunpack.c.l.b16 %v784
  %v853 = vunpack.c.l.b16 %v785
  %v854 = vunpack.c.l.b16 %v786
  %v855 = vunpack.c.l.b16 %v787
  %v856 = vunpack.c.l.b16 %v788
  %v857 = vunpack.c.l.b16 %v789
  %v858 = vunpack.c.l.b16 %v790
  %v859 = vunpack.c.l.b16 %v791
  %v860 = vunpack.c.l.b16 %v792
  %v861 = vunpack.c.l.b16 %v793
  %v862 = vunpack.c.l.b16 %v794
  %v863 = vunpack.c.l.b16 %v795
  %v864 = vunpack.c.l.b16 %v796
  %v865 = vunpack.c.l.b16 %v797
  %v866 = vunpack.c.l.b16 %v798
  %v867 = vunpack.c.l.b16 %v799
  %v868 = vunpack.c.l.b16 %v800
  %v869 = vunpack.c.l.b16 %v801
  %v870 = vunpack.c.l.b16 %v802
  %v871 = vpack.c.b16 %v840, %v839
  %v872 = vpack.c.b16 %v842, %v841
  %v873 = vpack.c.b16 %v844, %v843
  %v874 = vpack.c.b16 %v846, %v845
  %v875 = vpack.c.b16 %v848, %v847
  %v876 = vpack.c.b16 %v850, %v849
  %v877 = vpack.c.b16 %v852, %v851
  %v878 = vpack.c.b16 %v854, %v853
  %v879 = vpack.c.b16 %v856, %v855
  %v880 = vpack.c.b16 %v858, %v857
  %v881 = vpack.c.b16 %v860, %v859
  %v882 = vpack.c.b16 %v862, %v861
  %v883 = vpack.c.b16 %v864, %v863
  %v884 = vpack.c.b16 %v866, %v865
  %v885 = vpack.c.b16 %v868, %v867
  %v886 = vpack.c.b16 %v870, %v869
  %903 = vmatprep.subr.bf16.mxu0 0
  %904 = vmatpush1.bf16.msra.mxu0 %v871
  %905 = vmatprep.subr.bf16.mxu0 0
  %906 = vmatpush1.bf16.msra.mxu0 %v872
  %907 = vmatprep.subr.bf16.mxu0 0
  %908 = vmatpush1.bf16.msra.mxu0 %v873
  %909 = vmatprep.subr.bf16.mxu0 0
  %910 = vmatpush1.bf16.msra.mxu0 %v874
  %911 = vmatprep.subr.bf16.mxu0 0
  %912 = vmatpush1.bf16.msra.mxu0 %v875
  %913 = vmatprep.subr.bf16.mxu0 0
  %914 = vmatpush1.bf16.msra.mxu0 %v876
  %915 = vmatprep.subr.bf16.mxu0 0
  %916 = vmatpush1.bf16.msra.mxu0 %v877
  %917 = vmatprep.subr.bf16.mxu0 0
  %918 = vmatpush1.bf16.msra.mxu0 %v878
  %919 = vmatprep.subr.bf16.mxu0 0
  %920 = vmatpush1.bf16.msra.mxu0 %v879
  %921 = vmatprep.subr.bf16.mxu0 0
  %922 = vmatpush1.bf16.msra.mxu0 %v880
  %923 = vmatprep.subr.bf16.mxu0 0
  %924 = vmatpush1.bf16.msra.mxu0 %v881
  %925 = vmatprep.subr.bf16.mxu0 0
  %926 = vmatpush1.bf16.msra.mxu0 %v882
  %927 = vmatprep.subr.bf16.mxu0 0
  %928 = vmatpush1.bf16.msra.mxu0 %v883
  %929 = vmatprep.subr.bf16.mxu0 0
  %930 = vmatpush1.bf16.msra.mxu0 %v884
  %931 = vmatprep.subr.bf16.mxu0 0
  %932 = vmatpush1.bf16.msra.mxu0 %v885
  %933 = vmatprep.subr.bf16.mxu0 0
  %934 = vmatpush1.bf16.msra.mxu0 %v886
  %935 = vmatprep.mubr.bf16.mxu0 %v658
  %936 = vmatmul.mubr.bf16.gmra.mrb[0].mxu0 %v763
  %v937 = vpop.f32.mrb[0].mxu0
  %v938 = vadd.f32 %v806, %v937
  %v939 = vpop.f32.mrb[0].mxu0
  %v940 = vpop.f32.mrb[0].mxu0
  %v941 = vadd.f32 %v806, %v940
  %v942 = vpop.f32.mrb[0].mxu0
  %943 = vmatprep.mubr.bf16.mxu0 %v659
  %944 = vmatmul.mubr.bf16.gmra.mrb[0].mxu0 %v764
  %v945 = vpop.f32.mrb[0].mxu0
  %v946 = vadd.f32 %v806, %v945
  %v947 = vpop.f32.mrb[0].mxu0
  %v948 = vpop.f32.mrb[0].mxu0
  %v949 = vadd.f32 %v806, %v948
  %v950 = vpop.f32.mrb[0].mxu0
  %951 = vmatprep.mubr.bf16.mxu0 %v660
  %952 = vmatmul.mubr.bf16.gmra.mrb[0].mxu0 %v765
  %v953 = vpop.f32.mrb[0].mxu0
  %v954 = vadd.f32 %v806, %v953
  %v955 = vpop.f32.mrb[0].mxu0
  %v956 = vpop.f32.mrb[0].mxu0
  %v957 = vadd.f32 %v806, %v956
  %v958 = vpop.f32.mrb[0].mxu0
  %959 = vmatprep.mubr.bf16.mxu0 %v661
  %960 = vmatmul.mubr.bf16.gmra.mrb[0].mxu0 %v766
  %v961 = vpop.f32.mrb[0].mxu0
  %v962 = vadd.f32 %v806, %v961
  %v963 = vpop.f32.mrb[0].mxu0
  %v964 = vpop.f32.mrb[0].mxu0
  %v965 = vadd.f32 %v806, %v964
  %v966 = vpop.f32.mrb[0].mxu0
  %967 = vmatprep.mubr.bf16.mxu0 %v662
  %968 = vmatmul.mubr.bf16.gmra.mrb[0].mxu0 %v767
  %v969 = vpop.f32.mrb[0].mxu0
  %v970 = vadd.f32 %v806, %v969
  %v971 = vpop.f32.mrb[0].mxu0
  %v972 = vpop.f32.mrb[0].mxu0
  %v973 = vadd.f32 %v806, %v972
  %v974 = vpop.f32.mrb[0].mxu0
  %975 = vmatprep.mubr.bf16.mxu0 %v663
  %976 = vmatmul.mubr.bf16.gmra.mrb[0].mxu0 %v768
  %v977 = vpop.f32.mrb[0].mxu0
  %v978 = vadd.f32 %v806, %v977
  %v979 = vpop.f32.mrb[0].mxu0
  %v980 = vpop.f32.mrb[0].mxu0
  %v981 = vadd.f32 %v806, %v980
  %v982 = vpop.f32.mrb[0].mxu0
  %983 = vmatprep.mubr.bf16.mxu0 %v664
  %984 = vmatmul.mubr.bf16.gmra.mrb[0].mxu0 %v769
  %v985 = vpop.f32.mrb[0].mxu0
  %v986 = vadd.f32 %v806, %v985
  %v987 = vpop.f32.mrb[0].mxu0
  %v988 = vpop.f32.mrb[0].mxu0
  %v989 = vadd.f32 %v806, %v988
  %v990 = vpop.f32.mrb[0].mxu0
  %991 = vmatprep.mubr.bf16.mxu0 %v665
  %992 = vmatmul.mubr.bf16.gmra.mrb[0].mxu0 %v770
  %v993 = vpop.f32.mrb[0].mxu0
  %v994 = vadd.f32 %v806, %v993
  %v995 = vpop.f32.mrb[0].mxu0
  %v996 = vpop.f32.mrb[0].mxu0
  %v997 = vadd.f32 %v806, %v996
  %v998 = vpop.f32.mrb[0].mxu0
  %999 = vdwg.mxu0
  %v1000 = vmax.f32 %v938, 0.0
  %v1001 = vmax.f32 %v941, 0.0
  %v1002 = vmax.f32 %v946, 0.0
  %v1003 = vmax.f32 %v949, 0.0
  %v1004 = vmax.f32 %v954, 0.0
  %v1005 = vmax.f32 %v957, 0.0
  %v1006 = vmax.f32 %v962, 0.0
  %v1007 = vmax.f32 %v965, 0.0
  %v1008 = vmax.f32 %v970, 0.0
  %v1009 = vmax.f32 %v973, 0.0
  %v1010 = vmax.f32 %v978, 0.0
  %v1011 = vmax.f32 %v981, 0.0
  %v1012 = vmax.f32 %v986, 0.0
  %v1013 = vmax.f32 %v989, 0.0
  %v1014 = vmax.f32 %v994, 0.0
  %v1015 = vmax.f32 %v997, 0.0
  %v1016 = vadd.f32 %v1000, %v642
  %v1017 = vadd.f32 %v1001, %v643
  %v1018 = vadd.f32 %v1002, %v644
  %v1019 = vadd.f32 %v1003, %v645
  %v1020 = vadd.f32 %v1004, %v646
  %v1021 = vadd.f32 %v1005, %v647
  %v1022 = vadd.f32 %v1006, %v648
  %v1023 = vadd.f32 %v1007, %v649
  %v1024 = vadd.f32 %v1008, %v650
  %v1025 = vadd.f32 %v1009, %v651
  %v1026 = vadd.f32 %v1010, %v652
  %v1027 = vadd.f32 %v1011, %v653
  %v1028 = vadd.f32 %v1012, %v654
  %v1029 = vadd.f32 %v1013, %v655
  %v1030 = vadd.f32 %v1014, %v656
  %v1031 = vadd.f32 %v1015, %v657
  %v1032 = vpack.c.bf16 %v1017, %v1016
  %v1033 = vpack.c.bf16 %v1019, %v1018
  %v1034 = vpack.c.bf16 %v1021, %v1020
  %v1035 = vpack.c.bf16 %v1023, %v1022
  %v1036 = vpack.c.bf16 %v1025, %v1024
  %v1037 = vpack.c.bf16 %v1027, %v1026
  %v1038 = vpack.c.bf16 %v1029, %v1028
  %v1039 = vpack.c.bf16 %v1031, %v1030
  %1040 = vmatprep.subr.bf16.mxu0 0
  %1041 = vmatpush1.bf16.msra.mxu0 %v1032
  %1042 = vmatprep.subr.bf16.mxu0 0
  %1043 = vmatpush1.bf16.msra.mxu0 %v1033
  %1044 = vmatprep.subr.bf16.mxu0 0
  %1045 = vmatpush1.bf16.msra.mxu0 %v1034
  %1046 = vmatprep.subr.bf16.mxu0 0
  %1047 = vmatpush1.bf16.msra.mxu0 %v1035
  %1048 = vmatprep.subr.bf16.mxu0 0
  %1049 = vmatpush1.bf16.msra.mxu0 %v1036
  %1050 = vmatprep.subr.bf16.mxu0 0
  %1051 = vmatpush1.bf16.msra.mxu0 %v1037
  %1052 = vmatprep.subr.bf16.mxu0 0
  %1053 = vmatpush1.bf16.msra.mxu0 %v1038
  %1054 = vmatprep.subr.bf16.mxu0 0
  %1055 = vmatpush1.bf16.msra.mxu0 %v1039
  %1056 = vmatprep.subr.bf16.mxu0 0
  %1057 = vmatpush1.bf16.msra.mxu0 0
  %1058 = vmatprep.subr.bf16.mxu0 0
  %1059 = vmatpush1.bf16.msra.mxu0 0
  %1060 = vmatprep.subr.bf16.mxu0 0
  %1061 = vmatpush1.bf16.msra.mxu0 0
  %1062 = vmatprep.subr.bf16.mxu0 0
  %1063 = vmatpush1.bf16.msra.mxu0 0
  %1064 = vmatprep.subr.bf16.mxu0 0
  %1065 = vmatpush1.bf16.msra.mxu0 0
  %1066 = vmatprep.subr.bf16.mxu0 0
  %1067 = vmatpush1.bf16.msra.mxu0 0
  %1068 = vmatprep.subr.bf16.mxu0 0
  %1069 = vmatpush1.bf16.msra.mxu0 0
  %1070 = vmatprep.subr.bf16.mxu0 0
  %1071 = vmatpush1.bf16.msra.mxu0 0
  %1072 = vmatprep.mubr.bf16.mxu0 0
  %1073 = vmatmul.mubr.bf16.gmra.mrb[0].mxu0 %v276
  %v1074 = vpop.f32.mrb[0].mxu0
  %v1075 = vadd.f32 0.0, %v1074
  %v1076 = vpop.f32.mrb[0].mxu0
  %v1077 = vpop.f32.mrb[0].mxu0
  %v1078 = vadd.f32 0.0, %v1077
  %v1079 = vpop.f32.mrb[0].mxu0
  %1080 = vmatprep.mubr.bf16.mxu0 0
  %1081 = vmatmul.mubr.bf16.gmra.mrb[0].mxu0 %v277
  %v1082 = vpop.f32.mrb[0].mxu0
  %v1083 = vadd.f32 0.0, %v1082
  %v1084 = vpop.f32.mrb[0].mxu0
  %v1085 = vpop.f32.mrb[0].mxu0
  %v1086 = vadd.f32 0.0, %v1085
  %v1087 = vpop.f32.mrb[0].mxu0
  %1088 = vmatprep.mubr.bf16.mxu0 0
  %1089 = vmatmul.mubr.bf16.gmra.mrb[0].mxu0 %v278
  %v1090 = vpop.f32.mrb[0].mxu0
  %v1091 = vadd.f32 0.0, %v1090
  %v1092 = vpop.f32.mrb[0].mxu0
  %v1093 = vpop.f32.mrb[0].mxu0
  %v1094 = vadd.f32 0.0, %v1093
  %v1095 = vpop.f32.mrb[0].mxu0
  %1096 = vmatprep.mubr.bf16.mxu0 0
  %1097 = vmatmul.mubr.bf16.gmra.mrb[0].mxu0 %v279
  %v1098 = vpop.f32.mrb[0].mxu0
  %v1099 = vadd.f32 0.0, %v1098
  %v1100 = vpop.f32.mrb[0].mxu0
  %v1101 = vpop.f32.mrb[0].mxu0
  %v1102 = vadd.f32 0.0, %v1101
  %v1103 = vpop.f32.mrb[0].mxu0
  %1104 = vmatprep.mubr.bf16.mxu0 0
  %1105 = vmatmul.mubr.bf16.gmra.mrb[0].mxu0 %v280
  %v1106 = vpop.f32.mrb[0].mxu0
  %v1107 = vadd.f32 0.0, %v1106
  %v1108 = vpop.f32.mrb[0].mxu0
  %v1109 = vpop.f32.mrb[0].mxu0
  %v1110 = vadd.f32 0.0, %v1109
  %v1111 = vpop.f32.mrb[0].mxu0
  %1112 = vmatprep.mubr.bf16.mxu0 0
  %1113 = vmatmul.mubr.bf16.gmra.mrb[0].mxu0 %v281
  %v1114 = vpop.f32.mrb[0].mxu0
  %v1115 = vadd.f32 0.0, %v1114
  %v1116 = vpop.f32.mrb[0].mxu0
  %v1117 = vpop.f32.mrb[0].mxu0
  %v1118 = vadd.f32 0.0, %v1117
  %v1119 = vpop.f32.mrb[0].mxu0
  %1120 = vmatprep.mubr.bf16.mxu0 0
  %1121 = vmatmul.mubr.bf16.gmra.mrb[0].mxu0 %v282
  %v1122 = vpop.f32.mrb[0].mxu0
  %v1123 = vadd.f32 0.0, %v1122
  %v1124 = vpop.f32.mrb[0].mxu0
  %v1125 = vpop.f32.mrb[0].mxu0
  %v1126 = vadd.f32 0.0, %v1125
  %v1127 = vpop.f32.mrb[0].mxu0
  %1128 = vmatprep.mubr.bf16.mxu0 0
  %1129 = vmatmul.mubr.bf16.gmra.mrb[0].mxu0 %v283
  %v1130 = vpop.f32.mrb[0].mxu0
  %v1131 = vadd.f32 0.0, %v1130
  %v1132 = vpop.f32.mrb[0].mxu0
  %v1133 = vpop.f32.mrb[0].mxu0
  %v1134 = vadd.f32 0.0, %v1133
  %v1135 = vpop.f32.mrb[0].mxu0
  %1136 = vdwg.mxu0
  %v1137 = vpack.c.bf16 %v1078, %v1075
  %v1138 = vpack.c.bf16 %v1086, %v1083
  %v1139 = vpack.c.bf16 %v1094, %v1091
  %v1140 = vpack.c.bf16 %v1102, %v1099
  %v1141 = vpack.c.bf16 %v1110, %v1107
  %v1142 = vpack.c.bf16 %v1118, %v1115
  %v1143 = vpack.c.bf16 %v1126, %v1123
  %v1144 = vpack.c.bf16 %v1134, %v1131
  %s1145 = scalar_lea.vmem %s4, 128
  %v1146 = vld [vmem:[%s1145] sm:$0xf]
  %v1147 = vld [vmem:[%s1145 + $0x4] sm:$0xf]
  %v1148 = vld [vmem:[%s1145 + $0x8] sm:$0xf]
  %v1149 = vld [vmem:[%s1145 + $0xc] sm:$0xf]
  %v1150 = vld [vmem:[%s1145 + $0x10] sm:$0xf]
  %v1151 = vld [vmem:[%s1145 + $0x14] sm:$0xf]
  %v1152 = vld [vmem:[%s1145 + $0x18] sm:$0xf]
  %v1153 = vld [vmem:[%s1145 + $0x1c] sm:$0xf]
  %v1154 = vld [vmem:[%s1145 + $0x20] sm:$0xf]
  %v1155 = vld [vmem:[%s1145 + $0x24] sm:$0xf]
  %v1156 = vld [vmem:[%s1145 + $0x28] sm:$0xf]
  %v1157 = vld [vmem:[%s1145 + $0x2c] sm:$0xf]
  %v1158 = vld [vmem:[%s1145 + $0x30] sm:$0xf]
  %v1159 = vld [vmem:[%s1145 + $0x34] sm:$0xf]
  %v1160 = vld [vmem:[%s1145 + $0x38] sm:$0xf]
  %v1161 = vld [vmem:[%s1145 + $0x3c] sm:$0xf]
  %v1162 = vld [vmem:[%s1145 + $0x40] sm:$0xf]
  %v1163 = vld [vmem:[%s1145 + $0x44] sm:$0xf]
  %v1164 = vld [vmem:[%s1145 + $0x48] sm:$0xf]
  %v1165 = vld [vmem:[%s1145 + $0x4c] sm:$0xf]
  %v1166 = vld [vmem:[%s1145 + $0x50] sm:$0xf]
  %v1167 = vld [vmem:[%s1145 + $0x54] sm:$0xf]
  %v1168 = vld [vmem:[%s1145 + $0x58] sm:$0xf]
  %v1169 = vld [vmem:[%s1145 + $0x5c] sm:$0xf]
  %v1170 = vld [vmem:[%s1145 + $0x60] sm:$0xf]
  %v1171 = vld [vmem:[%s1145 + $0x64] sm:$0xf]
  %v1172 = vld [vmem:[%s1145 + $0x68] sm:$0xf]
  %v1173 = vld [vmem:[%s1145 + $0x6c] sm:$0xf]
  %v1174 = vld [vmem:[%s1145 + $0x70] sm:$0xf]
  %v1175 = vld [vmem:[%s1145 + $0x74] sm:$0xf]
  %v1176 = vld [vmem:[%s1145 + $0x78] sm:$0xf]
  %v1177 = vld [vmem:[%s1145 + $0x7c] sm:$0xf]
  %v1178 = vlaneseq
  %v1179 = vshrl.u32 %v1178, 7
  %v1180 = vsub.s32 2, %v1179
  %v1181 = vrot.slane %v70, %v1180
  %v1214 = vunpack.c.l.b16 %v1146
  %v1215 = vunpack.c.l.b16 %v1147
  %v1216 = vunpack.c.l.b16 %v1148
  %v1217 = vunpack.c.l.b16 %v1149
  %v1218 = vunpack.c.l.b16 %v1150
  %v1219 = vunpack.c.l.b16 %v1151
  %v1220 = vunpack.c.l.b16 %v1152
  %v1221 = vunpack.c.l.b16 %v1153
  %v1222 = vunpack.c.l.b16 %v1154
  %v1223 = vunpack.c.l.b16 %v1155
  %v1224 = vunpack.c.l.b16 %v1156
  %v1225 = vunpack.c.l.b16 %v1157
  %v1226 = vunpack.c.l.b16 %v1158
  %v1227 = vunpack.c.l.b16 %v1159
  %v1228 = vunpack.c.l.b16 %v1160
  %v1229 = vunpack.c.l.b16 %v1161
  %v1230 = vunpack.c.l.b16 %v1162
  %v1231 = vunpack.c.l.b16 %v1163
  %v1232 = vunpack.c.l.b16 %v1164
  %v1233 = vunpack.c.l.b16 %v1165
  %v1234 = vunpack.c.l.b16 %v1166
  %v1235 = vunpack.c.l.b16 %v1167
  %v1236 = vunpack.c.l.b16 %v1168
  %v1237 = vunpack.c.l.b16 %v1169
  %v1238 = vunpack.c.l.b16 %v1170
  %v1239 = vunpack.c.l.b16 %v1171
  %v1240 = vunpack.c.l.b16 %v1172
  %v1241 = vunpack.c.l.b16 %v1173
  %v1242 = vunpack.c.l.b16 %v1174
  %v1243 = vunpack.c.l.b16 %v1175
  %v1244 = vunpack.c.l.b16 %v1176
  %v1245 = vunpack.c.l.b16 %v1177
  %v1246 = vpack.c.b16 %v1215, %v1214
  %v1247 = vpack.c.b16 %v1217, %v1216
  %v1248 = vpack.c.b16 %v1219, %v1218
  %v1249 = vpack.c.b16 %v1221, %v1220
  %v1250 = vpack.c.b16 %v1223, %v1222
  %v1251 = vpack.c.b16 %v1225, %v1224
  %v1252 = vpack.c.b16 %v1227, %v1226
  %v1253 = vpack.c.b16 %v1229, %v1228
  %v1254 = vpack.c.b16 %v1231, %v1230
  %v1255 = vpack.c.b16 %v1233, %v1232
  %v1256 = vpack.c.b16 %v1235, %v1234
  %v1257 = vpack.c.b16 %v1237, %v1236
  %v1258 = vpack.c.b16 %v1239, %v1238
  %v1259 = vpack.c.b16 %v1241, %v1240
  %v1260 = vpack.c.b16 %v1243, %v1242
  %v1261 = vpack.c.b16 %v1245, %v1244
  %1278 = vmatprep.subr.bf16.mxu0 0
  %1279 = vmatpush1.bf16.msra.mxu0 %v1246
  %1280 = vmatprep.subr.bf16.mxu0 0
  %1281 = vmatpush1.bf16.msra.mxu0 %v1247
  %1282 = vmatprep.subr.bf16.mxu0 0
  %1283 = vmatpush1.bf16.msra.mxu0 %v1248
  %1284 = vmatprep.subr.bf16.mxu0 0
  %1285 = vmatpush1.bf16.msra.mxu0 %v1249
  %1286 = vmatprep.subr.bf16.mxu0 0
  %1287 = vmatpush1.bf16.msra.mxu0 %v1250
  %1288 = vmatprep.subr.bf16.mxu0 0
  %1289 = vmatpush1.bf16.msra.mxu0 %v1251
  %1290 = vmatprep.subr.bf16.mxu0 0
  %1291 = vmatpush1.bf16.msra.mxu0 %v1252
  %1292 = vmatprep.subr.bf16.mxu0 0
  %1293 = vmatpush1.bf16.msra.mxu0 %v1253
  %1294 = vmatprep.subr.bf16.mxu0 0
  %1295 = vmatpush1.bf16.msra.mxu0 %v1254
  %1296 = vmatprep.subr.bf16.mxu0 0
  %1297 = vmatpush1.bf16.msra.mxu0 %v1255
  %1298 = vmatprep.subr.bf16.mxu0 0
  %1299 = vmatpush1.bf16.msra.mxu0 %v1256
  %1300 = vmatprep.subr.bf16.mxu0 0
  %1301 = vmatpush1.bf16.msra.mxu0 %v1257
  %1302 = vmatprep.subr.bf16.mxu0 0
  %1303 = vmatpush1.bf16.msra.mxu0 %v1258
  %1304 = vmatprep.subr.bf16.mxu0 0
  %1305 = vmatpush1.bf16.msra.mxu0 %v1259
  %1306 = vmatprep.subr.bf16.mxu0 0
  %1307 = vmatpush1.bf16.msra.mxu0 %v1260
  %1308 = vmatprep.subr.bf16.mxu0 0
  %1309 = vmatpush1.bf16.msra.mxu0 %v1261
  %1310 = vmatprep.mubr.bf16.mxu0 %v1032
  %1311 = vmatmul.mubr.bf16.gmra.mrb[0].mxu0 %v1137
  %v1312 = vpop.f32.mrb[0].mxu0
  %v1313 = vadd.f32 %v1181, %v1312
  %v1314 = vpop.f32.mrb[0].mxu0
  %v1315 = vpop.f32.mrb[0].mxu0
  %v1316 = vadd.f32 %v1181, %v1315
  %v1317 = vpop.f32.mrb[0].mxu0
  %1318 = vmatprep.mubr.bf16.mxu0 %v1033
  %1319 = vmatmul.mubr.bf16.gmra.mrb[0].mxu0 %v1138
  %v1320 = vpop.f32.mrb[0].mxu0
  %v1321 = vadd.f32 %v1181, %v1320
  %v1322 = vpop.f32.mrb[0].mxu0
  %v1323 = vpop.f32.mrb[0].mxu0
  %v1324 = vadd.f32 %v1181, %v1323
  %v1325 = vpop.f32.mrb[0].mxu0
  %1326 = vmatprep.mubr.bf16.mxu0 %v1034
  %1327 = vmatmul.mubr.bf16.gmra.mrb[0].mxu0 %v1139
  %v1328 = vpop.f32.mrb[0].mxu0
  %v1329 = vadd.f32 %v1181, %v1328
  %v1330 = vpop.f32.mrb[0].mxu0
  %v1331 = vpop.f32.mrb[0].mxu0
  %v1332 = vadd.f32 %v1181, %v1331
  %v1333 = vpop.f32.mrb[0].mxu0
  %1334 = vmatprep.mubr.bf16.mxu0 %v1035
  %1335 = vmatmul.mubr.bf16.gmra.mrb[0].mxu0 %v1140
  %v1336 = vpop.f32.mrb[0].mxu0
  %v1337 = vadd.f32 %v1181, %v1336
  %v1338 = vpop.f32.mrb[0].mxu0
  %v1339 = vpop.f32.mrb[0].mxu0
  %v1340 = vadd.f32 %v1181, %v1339
  %v1341 = vpop.f32.mrb[0].mxu0
  %1342 = vmatprep.mubr.bf16.mxu0 %v1036
  %1343 = vmatmul.mubr.bf16.gmra.mrb[0].mxu0 %v1141
  %v1344 = vpop.f32.mrb[0].mxu0
  %v1345 = vadd.f32 %v1181, %v1344
  %v1346 = vpop.f32.mrb[0].mxu0
  %v1347 = vpop.f32.mrb[0].mxu0
  %v1348 = vadd.f32 %v1181, %v1347
  %v1349 = vpop.f32.mrb[0].mxu0
  %1350 = vmatprep.mubr.bf16.mxu0 %v1037
  %1351 = vmatmul.mubr.bf16.gmra.mrb[0].mxu0 %v1142
  %v1352 = vpop.f32.mrb[0].mxu0
  %v1353 = vadd.f32 %v1181, %v1352
  %v1354 = vpop.f32.mrb[0].mxu0
  %v1355 = vpop.f32.mrb[0].mxu0
  %v1356 = vadd.f32 %v1181, %v1355
  %v1357 = vpop.f32.mrb[0].mxu0
  %1358 = vmatprep.mubr.bf16.mxu0 %v1038
  %1359 = vmatmul.mubr.bf16.gmra.mrb[0].mxu0 %v1143
  %v1360 = vpop.f32.mrb[0].mxu0
  %v1361 = vadd.f32 %v1181, %v1360
  %v1362 = vpop.f32.mrb[0].mxu0
  %v1363 = vpop.f32.mrb[0].mxu0
  %v1364 = vadd.f32 %v1181, %v1363
  %v1365 = vpop.f32.mrb[0].mxu0
  %1366 = vmatprep.mubr.bf16.mxu0 %v1039
  %1367 = vmatmul.mubr.bf16.gmra.mrb[0].mxu0 %v1144
  %v1368 = vpop.f32.mrb[0].mxu0
  %v1369 = vadd.f32 %v1181, %v1368
  %v1370 = vpop.f32.mrb[0].mxu0
  %v1371 = vpop.f32.mrb[0].mxu0
  %v1372 = vadd.f32 %v1181, %v1371
  %v1373 = vpop.f32.mrb[0].mxu0
  %1374 = vdwg.mxu0
  %v1375 = vmax.f32 %v1313, 0.0
  %v1376 = vmax.f32 %v1316, 0.0
  %v1377 = vmax.f32 %v1321, 0.0
  %v1378 = vmax.f32 %v1324, 0.0
  %v1379 = vmax.f32 %v1329, 0.0
  %v1380 = vmax.f32 %v1332, 0.0
  %v1381 = vmax.f32 %v1337, 0.0
  %v1382 = vmax.f32 %v1340, 0.0
  %v1383 = vmax.f32 %v1345, 0.0
  %v1384 = vmax.f32 %v1348, 0.0
  %v1385 = vmax.f32 %v1353, 0.0
  %v1386 = vmax.f32 %v1356, 0.0
  %v1387 = vmax.f32 %v1361, 0.0
  %v1388 = vmax.f32 %v1364, 0.0
  %v1389 = vmax.f32 %v1369, 0.0
  %v1390 = vmax.f32 %v1372, 0.0
  %v1391 = vadd.f32 %v1375, %v1016
  %v1392 = vadd.f32 %v1376, %v1017
  %v1393 = vadd.f32 %v1377, %v1018
  %v1394 = vadd.f32 %v1378, %v1019
  %v1395 = vadd.f32 %v1379, %v1020
  %v1396 = vadd.f32 %v1380, %v1021
  %v1397 = vadd.f32 %v1381, %v1022
  %v1398 = vadd.f32 %v1382, %v1023
  %v1399 = vadd.f32 %v1383, %v1024
  %v1400 = vadd.f32 %v1384, %v1025
  %v1401 = vadd.f32 %v1385, %v1026
  %v1402 = vadd.f32 %v1386, %v1027
  %v1403 = vadd.f32 %v1387, %v1028
  %v1404 = vadd.f32 %v1388, %v1029
  %v1405 = vadd.f32 %v1389, %v1030
  %v1406 = vadd.f32 %v1390, %v1031
  %v1407 = vpack.c.bf16 %v1392, %v1391
  %v1408 = vpack.c.bf16 %v1394, %v1393
  %v1409 = vpack.c.bf16 %v1396, %v1395
  %v1410 = vpack.c.bf16 %v1398, %v1397
  %v1411 = vpack.c.bf16 %v1400, %v1399
  %v1412 = vpack.c.bf16 %v1402, %v1401
  %v1413 = vpack.c.bf16 %v1404, %v1403
  %v1414 = vpack.c.bf16 %v1406, %v1405
  %1415 = vst [vmem:[%s10] sm:$0xff] %v1391
  %1416 = vst [vmem:[%s10 + $0x8] sm:$0xff] %v1392
  %1417 = vst [vmem:[%s10 + $0x10] sm:$0xff] %v1393
  %1418 = vst [vmem:[%s10 + $0x18] sm:$0xff] %v1394
  %1419 = vst [vmem:[%s10 + $0x20] sm:$0xff] %v1395
  %1420 = vst [vmem:[%s10 + $0x28] sm:$0xff] %v1396
  %1421 = vst [vmem:[%s10 + $0x30] sm:$0xff] %v1397
  %1422 = vst [vmem:[%s10 + $0x38] sm:$0xff] %v1398
  %1423 = vst [vmem:[%s10 + $0x40] sm:$0xff] %v1399
  %1424 = vst [vmem:[%s10 + $0x48] sm:$0xff] %v1400
  %1425 = vst [vmem:[%s10 + $0x50] sm:$0xff] %v1401
  %1426 = vst [vmem:[%s10 + $0x58] sm:$0xff] %v1402
  %1427 = vst [vmem:[%s10 + $0x60] sm:$0xff] %v1403
  %1428 = vst [vmem:[%s10 + $0x68] sm:$0xff] %v1404
  %1429 = vst [vmem:[%s10 + $0x70] sm:$0xff] %v1405
  %1430 = vst [vmem:[%s10 + $0x78] sm:$0xff] %v1406
  %v1431 = vld [vmem:[%s6] sm:$0xf]
  %v1432 = vld [vmem:[%s6 + $0x4] sm:$0xf]
  %v1435 = vunpack.c.l.b16 %v1431
  %v1436 = vunpack.c.l.b16 %v1432
  %v1437 = vpack.c.b16 %v1436, %v1435
  %1439 = vmatprep.subr.bf16.mxu0 0
  %1440 = vmatpush1.bf16.msra.mxu0 %v1407
  %1441 = vmatprep.subr.bf16.mxu0 0
  %1442 = vmatpush1.bf16.msra.mxu0 %v1408
  %1443 = vmatprep.subr.bf16.mxu0 0
  %1444 = vmatpush1.bf16.msra.mxu0 %v1409
  %1445 = vmatprep.subr.bf16.mxu0 0
  %1446 = vmatpush1.bf16.msra.mxu0 %v1410
  %1447 = vmatprep.subr.bf16.mxu0 0
  %1448 = vmatpush1.bf16.msra.mxu0 %v1411
  %1449 = vmatprep.subr.bf16.mxu0 0
  %1450 = vmatpush1.bf16.msra.mxu0 %v1412
  %1451 = vmatprep.subr.bf16.mxu0 0
  %1452 = vmatpush1.bf16.msra.mxu0 %v1413
  %1453 = vmatprep.subr.bf16.mxu0 0
  %1454 = vmatpush1.bf16.msra.mxu0 %v1414
  %1455 = vmatprep.subr.bf16.mxu0 0
  %1456 = vmatpush1.bf16.msra.mxu0 0
  %1457 = vmatprep.subr.bf16.mxu0 0
  %1458 = vmatpush1.bf16.msra.mxu0 0
  %1459 = vmatprep.subr.bf16.mxu0 0
  %1460 = vmatpush1.bf16.msra.mxu0 0
  %1461 = vmatprep.subr.bf16.mxu0 0
  %1462 = vmatpush1.bf16.msra.mxu0 0
  %1463 = vmatprep.subr.bf16.mxu0 0
  %1464 = vmatpush1.bf16.msra.mxu0 0
  %1465 = vmatprep.subr.bf16.mxu0 0
  %1466 = vmatpush1.bf16.msra.mxu0 0
  %1467 = vmatprep.subr.bf16.mxu0 0
  %1468 = vmatpush1.bf16.msra.mxu0 0
  %1469 = vmatprep.subr.bf16.mxu0 0
  %1470 = vmatpush1.bf16.msra.mxu0 0
  %1471 = vmatprep.mubr.bf16.mxu0 0
  %1472 = vmatmul.mubr.bf16.gmra.mrb[0].mxu0 %v1437
  %v1473 = vpop.f32.mrb[0].mxu0
  %v1474 = vadd.f32 0.0, %v1473
  %v1475 = vpop.f32.mrb[0].mxu0
  %v1476 = vpop.f32.mrb[0].mxu0
  %v1477 = vadd.f32 0.0, %v1476
  %v1478 = vpop.f32.mrb[0].mxu0
  %1479 = vdwg.mxu0
  %v1480 = vpack.c.bf16 %v1477, %v1474
  %v1481 = vld [vmem:[%s7] sm:$0xf]
  %v1482 = vld [vmem:[%s7 + $0x4] sm:$0xf]
  %v1483 = vld [vmem:[%s7 + $0x8] sm:$0xf]
  %v1484 = vld [vmem:[%s7 + $0xc] sm:$0xf]
  %v1485 = vld [vmem:[%s7 + $0x10] sm:$0xf]
  %v1486 = vld [vmem:[%s7 + $0x14] sm:$0xf]
  %v1487 = vld [vmem:[%s7 + $0x18] sm:$0xf]
  %v1488 = vld [vmem:[%s7 + $0x1c] sm:$0xf]
  %v1489 = vld [vmem:[%s7 + $0x20] sm:$0xf]
  %v1490 = vld [vmem:[%s7 + $0x24] sm:$0xf]
  %v1491 = vld [vmem:[%s7 + $0x28] sm:$0xf]
  %v1492 = vld [vmem:[%s7 + $0x2c] sm:$0xf]
  %v1493 = vld [vmem:[%s7 + $0x30] sm:$0xf]
  %v1494 = vld [vmem:[%s7 + $0x34] sm:$0xf]
  %v1495 = vld [vmem:[%s7 + $0x38] sm:$0xf]
  %v1496 = vld [vmem:[%s7 + $0x3c] sm:$0xf]
  %v1497 = vlaneseq
  %v1498 = vshrl.u32 %v1497, 7
  %v1499 = vsub.s32 3, %v1498
  %v1500 = vrot.slane %v70, %v1499
  %v1517 = vunpack.c.l.b16 %v1481
  %v1518 = vunpack.c.l.b16 %v1482
  %v1519 = vunpack.c.l.b16 %v1483
  %v1520 = vunpack.c.l.b16 %v1484
  %v1521 = vunpack.c.l.b16 %v1485
  %v1522 = vunpack.c.l.b16 %v1486
  %v1523 = vunpack.c.l.b16 %v1487
  %v1524 = vunpack.c.l.b16 %v1488
  %v1525 = vunpack.c.l.b16 %v1489
  %v1526 = vunpack.c.l.b16 %v1490
  %v1527 = vunpack.c.l.b16 %v1491
  %v1528 = vunpack.c.l.b16 %v1492
  %v1529 = vunpack.c.l.b16 %v1493
  %v1530 = vunpack.c.l.b16 %v1494
  %v1531 = vunpack.c.l.b16 %v1495
  %v1532 = vunpack.c.l.b16 %v1496
  %v1533 = vpack.c.b16 %v1518, %v1517
  %v1534 = vpack.c.b16 %v1520, %v1519
  %v1535 = vpack.c.b16 %v1522, %v1521
  %v1536 = vpack.c.b16 %v1524, %v1523
  %v1537 = vpack.c.b16 %v1526, %v1525
  %v1538 = vpack.c.b16 %v1528, %v1527
  %v1539 = vpack.c.b16 %v1530, %v1529
  %v1540 = vpack.c.b16 %v1532, %v1531
  %1549 = vmatprep.subr.bf16.mxu0 0
  %1550 = vmatpush1.bf16.msra.mxu0 %v1533
  %1551 = vmatprep.subr.bf16.mxu0 0
  %1552 = vmatpush1.bf16.msra.mxu0 %v1534
  %1553 = vmatprep.subr.bf16.mxu0 0
  %1554 = vmatpush1.bf16.msra.mxu0 %v1535
  %1555 = vmatprep.subr.bf16.mxu0 0
  %1556 = vmatpush1.bf16.msra.mxu0 %v1536
  %1557 = vmatprep.subr.bf16.mxu0 0
  %1558 = vmatpush1.bf16.msra.mxu0 %v1537
  %1559 = vmatprep.subr.bf16.mxu0 0
  %1560 = vmatpush1.bf16.msra.mxu0 %v1538
  %1561 = vmatprep.subr.bf16.mxu0 0
  %1562 = vmatpush1.bf16.msra.mxu0 %v1539
  %1563 = vmatprep.subr.bf16.mxu0 0
  %1564 = vmatpush1.bf16.msra.mxu0 %v1540
  %1565 = vmatprep.subr.bf16.mxu0 0
  %1566 = vmatpush1.bf16.msra.mxu0 0
  %1567 = vmatprep.subr.bf16.mxu0 0
  %1568 = vmatpush1.bf16.msra.mxu0 0
  %1569 = vmatprep.subr.bf16.mxu0 0
  %1570 = vmatpush1.bf16.msra.mxu0 0
  %1571 = vmatprep.subr.bf16.mxu0 0
  %1572 = vmatpush1.bf16.msra.mxu0 0
  %1573 = vmatprep.subr.bf16.mxu0 0
  %1574 = vmatpush1.bf16.msra.mxu0 0
  %1575 = vmatprep.subr.bf16.mxu0 0
  %1576 = vmatpush1.bf16.msra.mxu0 0
  %1577 = vmatprep.subr.bf16.mxu0 0
  %1578 = vmatpush1.bf16.msra.mxu0 0
  %1579 = vmatprep.subr.bf16.mxu0 0
  %1580 = vmatpush1.bf16.msra.mxu0 0
  %1581 = vmatprep.mubr.bf16.mxu0 0
  %1582 = vmatmul.mubr.bf16.gmra.mrb[0].mxu0 %v1480
  %v1583 = vpop.f32.mrb[0].mxu0
  %v1584 = vadd.f32 %v1500, %v1583
  %v1585 = vpop.f32.mrb[0].mxu0
  %v1586 = vpop.f32.mrb[0].mxu0
  %v1587 = vadd.f32 %v1500, %v1586
  %v1588 = vpop.f32.mrb[0].mxu0
  %1589 = vdwg.mxu0
  %v1590 = vmax.f32 %v1584, 0.0
  %v1591 = vmax.f32 %v1587, 0.0
  %v1592 = vpack.c.bf16 %v1591, %v1590
  %v1593 = vld [vmem:[%s8] sm:$0xf]
  %v1594 = vld [vmem:[%s8 + $0x4] sm:$0xf]
  %v1595 = vld [vmem:[%s8 + $0x8] sm:$0xf]
  %v1596 = vld [vmem:[%s8 + $0xc] sm:$0xf]
  %v1597 = vld [vmem:[%s8 + $0x10] sm:$0xf]
  %v1598 = vld [vmem:[%s8 + $0x14] sm:$0xf]
  %v1599 = vld [vmem:[%s8 + $0x18] sm:$0xf]
  %v1600 = vld [vmem:[%s8 + $0x1c] sm:$0xf]
  %v1601 = vld [vmem:[%s8 + $0x20] sm:$0xf]
  %v1602 = vld [vmem:[%s8 + $0x24] sm:$0xf]
  %v1603 = vld [vmem:[%s8 + $0x28] sm:$0xf]
  %v1604 = vld [vmem:[%s8 + $0x2c] sm:$0xf]
  %v1605 = vld [vmem:[%s8 + $0x30] sm:$0xf]
  %v1606 = vld [vmem:[%s8 + $0x34] sm:$0xf]
  %v1607 = vld [vmem:[%s8 + $0x38] sm:$0xf]
  %v1608 = vld [vmem:[%s8 + $0x3c] sm:$0xf]
  %v1609 = vld [vmem:[%s9] sm:$0x1]
  %v1611 = vlaneseq
  %v1612 = vshrl.u32 %v1611, 7
  %v1613 = vsub.s32 0, %v1612
  %v1614 = vrot.slane %v1609, %v1613
  %v1632 = vunpack.c.l.b16 %v1593
  %v1633 = vunpack.c.l.b16 %v1594
  %v1634 = vunpack.c.l.b16 %v1595
  %v1635 = vunpack.c.l.b16 %v1596
  %v1636 = vunpack.c.l.b16 %v1597
  %v1637 = vunpack.c.l.b16 %v1598
  %v1638 = vunpack.c.l.b16 %v1599
  %v1639 = vunpack.c.l.b16 %v1600
  %v1640 = vunpack.c.l.b16 %v1601
  %v1641 = vunpack.c.l.b16 %v1602
  %v1642 = vunpack.c.l.b16 %v1603
  %v1643 = vunpack.c.l.b16 %v1604
  %v1644 = vunpack.c.l.b16 %v1605
  %v1645 = vunpack.c.l.b16 %v1606
  %v1646 = vunpack.c.l.b16 %v1607
  %v1647 = vunpack.c.l.b16 %v1608
  %v1648 = vpack.c.b16 %v1633, %v1632
  %v1649 = vpack.c.b16 %v1635, %v1634
  %v1650 = vpack.c.b16 %v1637, %v1636
  %v1651 = vpack.c.b16 %v1639, %v1638
  %v1652 = vpack.c.b16 %v1641, %v1640
  %v1653 = vpack.c.b16 %v1643, %v1642
  %v1654 = vpack.c.b16 %v1645, %v1644
  %v1655 = vpack.c.b16 %v1647, %v1646
  %1664 = vmatprep.subr.bf16.mxu0 0
  %1665 = vmatpush1.bf16.msra.mxu0 %v1648
  %1666 = vmatprep.subr.bf16.mxu0 0
  %1667 = vmatpush1.bf16.msra.mxu0 %v1649
  %1668 = vmatprep.subr.bf16.mxu0 0
  %1669 = vmatpush1.bf16.msra.mxu0 %v1650
  %1670 = vmatprep.subr.bf16.mxu0 0
  %1671 = vmatpush1.bf16.msra.mxu0 %v1651
  %1672 = vmatprep.subr.bf16.mxu0 0
  %1673 = vmatpush1.bf16.msra.mxu0 %v1652
  %1674 = vmatprep.subr.bf16.mxu0 0
  %1675 = vmatpush1.bf16.msra.mxu0 %v1653
  %1676 = vmatprep.subr.bf16.mxu0 0
  %1677 = vmatpush1.bf16.msra.mxu0 %v1654
  %1678 = vmatprep.subr.bf16.mxu0 0
  %1679 = vmatpush1.bf16.msra.mxu0 %v1655
  %1680 = vmatprep.subr.bf16.mxu0 0
  %1681 = vmatpush1.bf16.msra.mxu0 0
  %1682 = vmatprep.subr.bf16.mxu0 0
  %1683 = vmatpush1.bf16.msra.mxu0 0
  %1684 = vmatprep.subr.bf16.mxu0 0
  %1685 = vmatpush1.bf16.msra.mxu0 0
  %1686 = vmatprep.subr.bf16.mxu0 0
  %1687 = vmatpush1.bf16.msra.mxu0 0
  %1688 = vmatprep.subr.bf16.mxu0 0
  %1689 = vmatpush1.bf16.msra.mxu0 0
  %1690 = vmatprep.subr.bf16.mxu0 0
  %1691 = vmatpush1.bf16.msra.mxu0 0
  %1692 = vmatprep.subr.bf16.mxu0 0
  %1693 = vmatpush1.bf16.msra.mxu0 0
  %1694 = vmatprep.subr.bf16.mxu0 0
  %1695 = vmatpush1.bf16.msra.mxu0 0
  %1696 = vmatprep.mubr.bf16.mxu0 0
  %1697 = vmatmul.mubr.bf16.gmra.mrb[0].mxu0 %v1592
  %v1698 = vpop.f32.mrb[0].mxu0
  %v1699 = vadd.f32 %v1614, %v1698
  %v1700 = vpop.f32.mrb[0].mxu0
  %v1701 = vpop.f32.mrb[0].mxu0
  %v1702 = vadd.f32 %v1614, %v1701
  %v1703 = vpop.f32.mrb[0].mxu0
  %1704 = vdwg.mxu0
  %1705 = vst [vmem:[%s11] sm:$0xff] %v1699
  %1706 = vst [vmem:[%s11 + $0x8] sm:$0xff] %v1702
  // Predicated region
  $region42: #{model_forward.1} parent=0 // pred_check
    _
  $region43: #{model_forward.1} parent=0 // pred_check_branch
    %1708 = sbr.rel (0) target = $region45
  $region44: #{model_forward.1} parent=0 // pred_region
    _
  $region45: #{model_forward.1} parent=0 // pred_fallthru
    _
  // Predicated region
  $region46: #{model_forward.1} parent=0 // pred_check
    _
  $region47: #{model_forward.1} parent=0 // pred_check_branch
    %1710 = sbr.rel (0) target = $region49
  $region48: #{model_forward.1} parent=0 // pred_region
    _
  $region49: #{model_forward.1} parent=0 // pred_fallthru
    _
  // Predicated region
  $region50: #{model_forward.1} parent=0 // pred_check
    _
  $region51: #{model_forward.1} parent=0 // pred_check_branch
    %1712 = sbr.rel (0) target = $region53
  $region52: #{model_forward.1} parent=0 // pred_region
    _
  $region53: #{model_forward.1} parent=0 // pred_fallthru
    _
  // Predicated region
  $region54: #{model_forward.1} parent=0 // pred_check
    _
  $region55: #{model_forward.1} parent=0 // pred_check_branch
    %1714 = sbr.rel (0) target = $region57
  $region56: #{model_forward.1} parent=0 // pred_region
    _
  $region57: #{model_forward.1} parent=0 // pred_fallthru
    _

</llo_original>
